<compile_context>
chip_gen: v7x
topology: tpu7x:2x2x1
jax: 0.10.0
libtpu: 0.0.40
codegen_flags: <defaults>
</compile_context>

<pallas_src>
import functools

import jax
import jax.numpy as jnp
from jax.experimental import pallas as pl
from jax.experimental.pallas import tpu as pltpu


def _round_up(v, m):
    return (v + m - 1) // m * m


def _cdiv(a, b):
    return -(-a // b)


# ----------------------------------------------------------------------------- kernel ---
def _mlp_block_kernel(x_ref, w_in_ref, b_in_ref,
                      w1_ref, b1_ref, gamma_ref, beta_ref,
                      w2_ref, b2_ref,
                      w_out_ref, b_out_ref,
                      mask_ref, alphas_ref, o_ref, *, hidden_true, mask_needed):
    # in_proj  (MXU, f32 accumulation)
    x = x_ref[...]
    h0 = jnp.dot(x, w_in_ref[...], preferred_element_type=jnp.float32) + b_in_ref[...]

    # residual branch: Linear -> LayerNorm -> PReLU -> Linear
    h1 = jnp.dot(h0.astype(w1_ref.dtype), w1_ref[...],
                 preferred_element_type=jnp.float32) + b1_ref[...]

    inv_h = jnp.float32(1.0 / hidden_true)
    # Padded hidden columns of h1 are exactly zero (zero-padded weights/biases), so plain
    # sums give true-column statistics; only the variance needs the padded columns masked.
    mean = jnp.sum(h1, axis=-1, keepdims=True) * inv_h
    centered = h1 - mean
    centered_for_var = centered * mask_ref[...] if mask_needed else centered
    var = jnp.sum(centered_for_var * centered_for_var, axis=-1, keepdims=True) * inv_h
    # fold gamma into the rsqrt scale (rsqrt lands on the EUP slot)
    scale = jax.lax.rsqrt(var + 1e-5) * gamma_ref[...]
    ln = centered * scale + beta_ref[...]

    a1 = alphas_ref[0]                         # PReLU alpha (inner), scalar from SMEM
    act1 = jnp.where(ln >= 0, ln, a1 * ln)

    h2 = jnp.dot(act1.astype(w2_ref.dtype), w2_ref[...],
                 preferred_element_type=jnp.float32) + b2_ref[...]
    res = h2 + h0                              # residual add

    # out_proj + PReLU
    out = jnp.dot(res.astype(w_out_ref.dtype), w_out_ref[...],
                  preferred_element_type=jnp.float32) + b_out_ref[...]
    a2 = alphas_ref[1]                         # PReLU alpha (outer), scalar from SMEM
    o_ref[...] = jnp.where(out >= 0, out, a2 * out).astype(o_ref.dtype)


# ------------------------------------------------------------------- hardware / tiling ---
def _tpu_topology():
    """Return (physical VMEM bytes per TensorCore, has_two_tensorcores)."""
    vmem = None
    try:
        vmem = int(pltpu.get_tpu_info().vmem_capacity_bytes)
    except Exception:
        vmem = None
    kind = ""
    try:
        kind = jax.devices()[0].device_kind.lower()
    except Exception:
        pass
    if vmem is None:
        # Unknown part: assume the conservative (v7x-class) 64 MiB budget.
        vmem = 64 * 2**20 if ("v7" in kind or not kind) else 128 * 2**20
    two_cores = ("v7" in kind) or (vmem <= 80 * 2**20)
    return vmem, two_cores


def _choose_tm(n_rows, per_row_bytes, fixed_bytes, budget, two_cores):
    """Largest row tile (multiple of 8, <=1024) fitting the VMEM budget, with tiles
    balanced over grid steps; on 2-TensorCore parts force an even step count."""
    n8 = _round_up(n_rows, 8)
    tm = 1024
    while tm > 8 and fixed_bytes + tm * per_row_bytes > budget:
        tm //= 2
    tm = min(tm, n8)
    steps = _cdiv(n8, tm)
    if two_cores and n8 >= 256 and steps % 2:
        steps += 1                       # even split across v7x's two TensorCores
    tm = _round_up(_cdiv(n8, steps), 8)  # balance tiles; avoids a mostly-padding last tile
    return max(tm, 8)


# -------------------------------------------------------------------------- parameters ---
def prepare_params(params, compute_dtype=jnp.float32):
    """Pad all feature dims to multiples of 128 and cast weights to the matmul operand
    dtype ONCE, outside any jitted call path.  Returns (padded_params, true_dims)."""
    in_dim = params["w_in"].shape[0]
    hidden = params["w1"].shape[0]
    out_dim = params["w_out"].shape[1]
    in_p, hid_p, out_p = (_round_up(d, 128) for d in (in_dim, hidden, out_dim))

    def pad2(a, rows, cols, dtype=None):
        a = jnp.pad(a, ((0, rows - a.shape[0]), (0, cols - a.shape[1])))
        return a if dtype is None else a.astype(dtype)

    padded = dict(
        w_in=pad2(params["w_in"], in_p, hid_p, compute_dtype),
        b_in=pad2(params["b_in"], 1, hid_p),
        w1=pad2(params["w1"], hid_p, hid_p, compute_dtype),
        b1=pad2(params["b1"], 1, hid_p),
        gamma=pad2(params["gamma"], 1, hid_p),
        beta=pad2(params["beta"], 1, hid_p),
        w2=pad2(params["w2"], hid_p, hid_p, compute_dtype),
        b2=pad2(params["b2"], 1, hid_p),
        w_out=pad2(params["w_out"], hid_p, out_p, compute_dtype),
        b_out=pad2(params["b_out"], 1, out_p),
        # f32 column mask for the LayerNorm variance over the true hidden width.
        mask=(jnp.arange(hid_p) < hidden).astype(jnp.float32).reshape(1, hid_p),
        alphas=jnp.concatenate([params["alpha1"].reshape(-1),
                                params["alpha2"].reshape(-1)]).astype(jnp.float32),
    )
    padded = jax.tree_util.tree_map(jax.block_until_ready, padded)
    return padded, (in_dim, hidden, out_dim)


# ------------------------------------------------------------------------------ wrapper ---
@functools.partial(jax.jit,
                   static_argnames=("dims", "compute_dtype", "single_buffer_weights"))
def _mlp_block_padded(x, padded, *, dims, compute_dtype, single_buffer_weights):
    in_dim, hidden, out_dim = dims
    N = x.shape[0]
    in_p = padded["w_in"].shape[0]
    hid_p = padded["w1"].shape[0]
    out_p = padded["w_out"].shape[1]

    vmem_cap, two_cores = _tpu_topology()
    if vmem_cap <= 80 * 2**20:        # v7x-class: 64 MiB per TC, leave Mosaic headroom
        budget, vmem_limit_cap = 44 * 2**20, 56 * 2**20
    else:                             # v5e / v6e: 128 MiB physical VMEM
        budget, vmem_limit_cap = 100 * 2**20, 112 * 2**20

    # --- VMEM accounting ---
    w_item = jnp.dtype(compute_dtype).itemsize
    wbuf = 1 if single_buffer_weights else 2
    weight_bytes = w_item * (in_p * hid_p + 2 * hid_p * hid_p + hid_p * out_p)
    vec_bytes = 4 * (6 * hid_p + out_p)          # b_in,b1,gamma,beta,b2,mask + b_out (f32)
    fixed_bytes = wbuf * (weight_bytes + vec_bytes)
    per_row_bytes = (2 * w_item * in_p           # x tile, double-buffered
                     + 2 * w_item * out_p        # out tile (compute dtype), double-buffered
                     + 4 * (6 * hid_p + 2 * out_p)   # live f32 temps: h0,h1,centered,ln,h2,res + out
                     + w_item * 3 * hid_p)           # operand cast copies for the hidden matmuls

    if fixed_bytes + 8 * per_row_bytes > budget:
        # Fully-resident weights do not fit; a hidden-blocked variant (grid over hid_p with
        # a VMEM f32 accumulator + pl.when init/finalize) would be required at such sizes.
        raise ValueError("MlpBlock weights exceed the per-generation VMEM budget; "
                         "hidden dimension too large for the fully-resident kernel.")

    tm = _choose_tm(N, per_row_bytes, fixed_bytes, budget, two_cores)
    N_pad = _round_up(N, tm)
    need = fixed_bytes + tm * per_row_bytes
    vmem_limit = int(min(vmem_limit_cap, max(32 * 2**20, int(need * 1.25))))

    x_p = jnp.pad(x, ((0, N_pad - N), (0, in_p - in_dim))).astype(compute_dtype)

    def invariant(shape):
        # Loop-invariant operand: constant index_map -> no per-step re-DMA; single buffer
        # so resident weights do not cost 2x VMEM.
        if single_buffer_weights:
            return pl.BlockSpec(shape, lambda i: (0, 0), pipeline_mode=pl.Buffered(1))
        return pl.BlockSpec(shape, lambda i: (0, 0))

    grid_spec = pltpu.PrefetchScalarGridSpec(
        num_scalar_prefetch=0,
        grid=(N_pad // tm,),
        in_specs=[
            pl.BlockSpec((tm, in_p), lambda i: (i, 0)),           # x tile
            invariant((in_p, hid_p)),                             # w_in
            invariant((1, hid_p)),                                # b_in
            invariant((hid_p, hid_p)),                            # w1
            invariant((1, hid_p)),                                # b1
            invariant((1, hid_p)),                                # ln gamma
            invariant((1, hid_p)),                                # ln beta
            invariant((hid_p, hid_p)),                            # w2
            invariant((1, hid_p)),                                # b2
            invariant((hid_p, out_p)),                            # w_out
            invariant((1, out_p)),                                # b_out
            invariant((1, hid_p)),                                # variance mask
            pl.BlockSpec(memory_space=pltpu.MemorySpace.SMEM),    # prelu alphas (2,)
        ],
        out_specs=pl.BlockSpec((tm, out_p), lambda i: (i, 0)),
    )

    out_full = pl.pallas_call(
        functools.partial(_mlp_block_kernel,
                          hidden_true=hidden,
                          mask_needed=(hidden != hid_p)),
        out_shape=jax.ShapeDtypeStruct((N_pad, out_p), compute_dtype),
        grid_spec=grid_spec,
        compiler_params=pltpu.CompilerParams(
            dimension_semantics=("parallel",),
            vmem_limit_bytes=vmem_limit,
        ),
    )(x_p, padded["w_in"], padded["b_in"], padded["w1"], padded["b1"],
      padded["gamma"], padded["beta"], padded["w2"], padded["b2"],
      padded["w_out"], padded["b_out"], padded["mask"], padded["alphas"])

    return out_full[:N, :out_dim]


def mlp_block(x, padded_params, dims, *, compute_dtype=jnp.float32):
    """Fused MlpBlock forward. `padded_params`, `dims` come from prepare_params()."""
    try:
        return _mlp_block_padded(x, padded_params, dims=dims,
                                 compute_dtype=compute_dtype,
                                 single_buffer_weights=True)
    except Exception:
        # Some Pallas versions reject pl.Buffered(1); retry with default double-buffering.
        return _mlp_block_padded(x, padded_params, dims=dims,
                                 compute_dtype=compute_dtype,
                                 single_buffer_weights=False)


# -------------------------------------------------------------------- init & reference ---
def init_params(key, in_dim, hidden, out_dim):
    """Deterministic synthetic init (uniform fan-in scaling, like nn.Linear defaults)."""
    ks = jax.random.split(key, 8)

    def linear(kw, kb, fan_in, fan_out):
        bound = 1.0 / jnp.sqrt(float(fan_in))
        w = jax.random.uniform(kw, (fan_in, fan_out), jnp.float32, -bound, bound)
        b = jax.random.uniform(kb, (1, fan_out), jnp.float32, -bound, bound)
        return w, b

    w_in, b_in = linear(ks[0], ks[1], in_dim, hidden)
    w1, b1 = linear(ks[2], ks[3], hidden, hidden)
    w2, b2 = linear(ks[4], ks[5], hidden, hidden)
    w_out, b_out = linear(ks[6], ks[7], hidden, out_dim)

    return dict(
        w_in=w_in, b_in=b_in,
        w1=w1, b1=b1,
        gamma=jnp.ones((1, hidden), jnp.float32),
        beta=jnp.zeros((1, hidden), jnp.float32),
        alpha1=jnp.full((1, 1), 0.25, jnp.float32),
        w2=w2, b2=b2,
        w_out=w_out, b_out=b_out,
        alpha2=jnp.full((1, 1), 0.25, jnp.float32),
    )


def mlp_block_ref(x, p, compute_dtype=jnp.float32):
    """Pure-JAX reference (same matmul operand dtype as the kernel, f32 everywhere else)."""
    cd = compute_dtype
    dot = lambda a, w: jnp.dot(a.astype(cd), w.astype(cd),
                               preferred_element_type=jnp.float32)
    prelu = lambda v, a: jnp.where(v >= 0, v, a * v)
    h0 = dot(x, p["w_in"]) + p["b_in"]
    h1 = dot(h0, p["w1"]) + p["b1"]
    mean = jnp.mean(h1, axis=-1, keepdims=True)
    var = jnp.mean((h1 - mean) ** 2, axis=-1, keepdims=True)
    ln = (h1 - mean) * jax.lax.rsqrt(var + 1e-5) * p["gamma"] + p["beta"]
    h2 = dot(prelu(ln, p["alpha1"][0, 0]), p["w2"]) + p["b2"]
    res = h2 + h0
    out = dot(res, p["w_out"]) + p["b_out"]
    return prelu(out, p["alpha2"][0, 0])


# --------------------------------------------------------------------------------- main ---
if __name__ == "__main__":
    key = jax.random.PRNGKey(0)
    k_x, k_p = jax.random.split(key)

    N, in_dim, hidden, out_dim = 128, 24, 32, 16
    x = jax.random.normal(k_x, (N, in_dim), jnp.float32)
    params = init_params(k_p, in_dim, hidden, out_dim)

    # f32 path: matches the PyTorch module's fp32 semantics.
    padded_f32, dims = prepare_params(params, compute_dtype=jnp.float32)
    out = jax.block_until_ready(mlp_block(x, padded_f32, dims))
    ref = mlp_block_ref(x, params)
    assert out.shape == (N, out_dim)
    assert jnp.allclose(out, ref, atol=1e-4, rtol=1e-4), "f32 mismatch vs reference"

    # bf16-on-MXU fast path (recommended on v6e/v7x): bf16 operands + bf16 output,
    # f32 accumulation and f32 LayerNorm/PReLU math inside the kernel.
    padded_bf16, dims_b = prepare_params(params, compute_dtype=jnp.bfloat16)
    out_bf16 = jax.block_until_ready(
        mlp_block(x, padded_bf16, dims_b, compute_dtype=jnp.bfloat16))
    ref_bf16 = mlp_block_ref(x, params, compute_dtype=jnp.bfloat16)
    assert jnp.allclose(out_bf16.astype(jnp.float32), ref_bf16,
                        atol=2e-2, rtol=2e-2), "bf16 mismatch vs reference"

    print("KERNEL_OK")
</pallas_src>

<mosaic_0001>
module attributes {stable_mosaic.version = 11 : i64} {
  func.func @_mlp_block_kernel(%arg0: i32, %arg1: memref<128x128xf32, #tpu.memory_space<vmem>>, %arg2: memref<128x128xf32, #tpu.memory_space<vmem>>, %arg3: memref<1x128xf32, #tpu.memory_space<vmem>>, %arg4: memref<128x128xf32, #tpu.memory_space<vmem>>, %arg5: memref<1x128xf32, #tpu.memory_space<vmem>>, %arg6: memref<1x128xf32, #tpu.memory_space<vmem>>, %arg7: memref<1x128xf32, #tpu.memory_space<vmem>>, %arg8: memref<128x128xf32, #tpu.memory_space<vmem>>, %arg9: memref<1x128xf32, #tpu.memory_space<vmem>>, %arg10: memref<128x128xf32, #tpu.memory_space<vmem>>, %arg11: memref<1x128xf32, #tpu.memory_space<vmem>>, %arg12: memref<1x128xf32, #tpu.memory_space<vmem>>, %arg13: memref<2xf32, #tpu.memory_space<smem>>, %arg14: memref<128x128xf32, #tpu.memory_space<vmem>>) attributes {dimension_semantics = [#tpu.dimension_semantics<parallel>], iteration_bounds = array<i64: 1>, scalar_prefetch = 0 : i64, scratch_operands = 0 : i64, tpu.core_type = #tpu.core_type<tc>, window_params = [{transform_indices = @transform_0, window_bounds = array<i64: 128, 128>}, {pipeline_mode = #tpu.pipeline_mode<synchronous>, transform_indices = @transform_1, window_bounds = array<i64: 128, 128>}, {pipeline_mode = #tpu.pipeline_mode<synchronous>, transform_indices = @transform_2, window_bounds = array<i64: 1, 128>}, {pipeline_mode = #tpu.pipeline_mode<synchronous>, transform_indices = @transform_3, window_bounds = array<i64: 128, 128>}, {pipeline_mode = #tpu.pipeline_mode<synchronous>, transform_indices = @transform_4, window_bounds = array<i64: 1, 128>}, {pipeline_mode = #tpu.pipeline_mode<synchronous>, transform_indices = @transform_5, window_bounds = array<i64: 1, 128>}, {pipeline_mode = #tpu.pipeline_mode<synchronous>, transform_indices = @transform_6, window_bounds = array<i64: 1, 128>}, {pipeline_mode = #tpu.pipeline_mode<synchronous>, transform_indices = @transform_7, window_bounds = array<i64: 128, 128>}, {pipeline_mode = #tpu.pipeline_mode<synchronous>, transform_indices = @transform_8, window_bounds = array<i64: 1, 128>}, {pipeline_mode = #tpu.pipeline_mode<synchronous>, transform_indices = @transform_9, window_bounds = array<i64: 128, 128>}, {pipeline_mode = #tpu.pipeline_mode<synchronous>, transform_indices = @transform_10, window_bounds = array<i64: 1, 128>}, {pipeline_mode = #tpu.pipeline_mode<synchronous>, transform_indices = @transform_11, window_bounds = array<i64: 1, 128>}, {transform_indices = @transform_12, window_bounds = array<i64: 2>}, {transform_indices = @transform_13, window_bounds = array<i64: 128, 128>}]} {
    %c0 = arith.constant 0 : index
    %c0_0 = arith.constant 0 : index
    %0 = vector.load %arg1[%c0, %c0_0] : memref<128x128xf32, #tpu.memory_space<vmem>>, vector<128x128xf32>
    %c0_1 = arith.constant 0 : index
    %c0_2 = arith.constant 0 : index
    %1 = vector.load %arg2[%c0_1, %c0_2] : memref<128x128xf32, #tpu.memory_space<vmem>>, vector<128x128xf32>
    %cst = arith.constant dense<0.000000e+00> : vector<128x128xf32>
    %2 = tpu.matmul %0, %1, %cst {dimension_numbers = #tpu.dot_dimension_numbers<[1], [0], [0], [1], [0, 0, 1, 1], [], []>} : vector<128x128xf32>, vector<128x128xf32>, vector<128x128xf32> -> vector<128x128xf32>
    %c0_3 = arith.constant 0 : index
    %c0_4 = arith.constant 0 : index
    %3 = vector.load %arg3[%c0_3, %c0_4] : memref<1x128xf32, #tpu.memory_space<vmem>>, vector<1x128xf32>
    %4 = vector.broadcast %3 : vector<1x128xf32> to vector<128x128xf32>
    %5 = arith.addf %2, %4 : vector<128x128xf32>
    %c0_5 = arith.constant 0 : index
    %c0_6 = arith.constant 0 : index
    %6 = vector.load %arg4[%c0_5, %c0_6] : memref<128x128xf32, #tpu.memory_space<vmem>>, vector<128x128xf32>
    %cst_7 = arith.constant dense<0.000000e+00> : vector<128x128xf32>
    %7 = tpu.matmul %5, %6, %cst_7 {dimension_numbers = #tpu.dot_dimension_numbers<[1], [0], [0], [1], [0, 0, 1, 1], [], []>} : vector<128x128xf32>, vector<128x128xf32>, vector<128x128xf32> -> vector<128x128xf32>
    %c0_8 = arith.constant 0 : index
    %c0_9 = arith.constant 0 : index
    %8 = vector.load %arg5[%c0_8, %c0_9] : memref<1x128xf32, #tpu.memory_space<vmem>>, vector<1x128xf32>
    %9 = vector.broadcast %8 : vector<1x128xf32> to vector<128x128xf32>
    %10 = arith.addf %7, %9 : vector<128x128xf32>
    %cst_10 = arith.constant dense<0.000000e+00> : vector<128xf32>
    %11 = vector.multi_reduction <add>, %10, %cst_10 [1] : vector<128x128xf32> to vector<128xf32>
    %12 = vector.shape_cast %11 : vector<128xf32> to vector<128x1xf32>
    %cst_11 = arith.constant 3.125000e-02 : f32
    %13 = vector.broadcast %cst_11 : f32 to vector<128x1xf32>
    %14 = arith.mulf %12, %13 : vector<128x1xf32>
    %15 = vector.broadcast %14 : vector<128x1xf32> to vector<128x128xf32>
    %16 = arith.subf %10, %15 : vector<128x128xf32>
    %c0_12 = arith.constant 0 : index
    %c0_13 = arith.constant 0 : index
    %17 = vector.load %arg12[%c0_12, %c0_13] : memref<1x128xf32, #tpu.memory_space<vmem>>, vector<1x128xf32>
    %18 = vector.broadcast %17 : vector<1x128xf32> to vector<128x128xf32>
    %19 = arith.mulf %16, %18 : vector<128x128xf32>
    %20 = arith.mulf %19, %19 : vector<128x128xf32>
    %cst_14 = arith.constant dense<0.000000e+00> : vector<128xf32>
    %21 = vector.multi_reduction <add>, %20, %cst_14 [1] : vector<128x128xf32> to vector<128xf32>
    %22 = vector.shape_cast %21 : vector<128xf32> to vector<128x1xf32>
    %cst_15 = arith.constant 3.125000e-02 : f32
    %23 = vector.broadcast %cst_15 : f32 to vector<128x1xf32>
    %24 = arith.mulf %22, %23 : vector<128x1xf32>
    %cst_16 = arith.constant 9.99999974E-6 : f32
    %25 = vector.broadcast %cst_16 : f32 to vector<128x1xf32>
    %26 = arith.addf %24, %25 : vector<128x1xf32>
    %27 = math.rsqrt %26 : vector<128x1xf32>
    %c0_17 = arith.constant 0 : index
    %c0_18 = arith.constant 0 : index
    %28 = vector.load %arg6[%c0_17, %c0_18] : memref<1x128xf32, #tpu.memory_space<vmem>>, vector<1x128xf32>
    %29 = vector.broadcast %27 : vector<128x1xf32> to vector<128x128xf32>
    %30 = vector.broadcast %28 : vector<1x128xf32> to vector<128x128xf32>
    %31 = arith.mulf %29, %30 : vector<128x128xf32>
    %32 = arith.mulf %16, %31 : vector<128x128xf32>
    %c0_19 = arith.constant 0 : index
    %c0_20 = arith.constant 0 : index
    %33 = vector.load %arg7[%c0_19, %c0_20] : memref<1x128xf32, #tpu.memory_space<vmem>>, vector<1x128xf32>
    %34 = vector.broadcast %33 : vector<1x128xf32> to vector<128x128xf32>
    %35 = arith.addf %32, %34 : vector<128x128xf32>
    %c0_21 = arith.constant 0 : index
    %36 = memref.load %arg13[%c0_21] : memref<2xf32, #tpu.memory_space<smem>>
    %cst_22 = arith.constant 0.000000e+00 : f32
    %37 = vector.broadcast %cst_22 : f32 to vector<128x128xf32>
    %38 = arith.cmpf oge, %35, %37 : vector<128x128xf32>
    %39 = vector.broadcast %36 : f32 to vector<128x128xf32>
    %40 = arith.mulf %39, %35 : vector<128x128xf32>
    %41 = arith.select %38, %35, %40 : vector<128x128xi1>, vector<128x128xf32>
    %c0_23 = arith.constant 0 : index
    %c0_24 = arith.constant 0 : index
    %42 = vector.load %arg8[%c0_23, %c0_24] : memref<128x128xf32, #tpu.memory_space<vmem>>, vector<128x128xf32>
    %cst_25 = arith.constant dense<0.000000e+00> : vector<128x128xf32>
    %43 = tpu.matmul %41, %42, %cst_25 {dimension_numbers = #tpu.dot_dimension_numbers<[1], [0], [0], [1], [0, 0, 1, 1], [], []>} : vector<128x128xf32>, vector<128x128xf32>, vector<128x128xf32> -> vector<128x128xf32>
    %c0_26 = arith.constant 0 : index
    %c0_27 = arith.constant 0 : index
    %44 = vector.load %arg9[%c0_26, %c0_27] : memref<1x128xf32, #tpu.memory_space<vmem>>, vector<1x128xf32>
    %45 = vector.broadcast %44 : vector<1x128xf32> to vector<128x128xf32>
    %46 = arith.addf %43, %45 : vector<128x128xf32>
    %47 = arith.addf %46, %5 : vector<128x128xf32>
    %c0_28 = arith.constant 0 : index
    %c0_29 = arith.constant 0 : index
    %48 = vector.load %arg10[%c0_28, %c0_29] : memref<128x128xf32, #tpu.memory_space<vmem>>, vector<128x128xf32>
    %cst_30 = arith.constant dense<0.000000e+00> : vector<128x128xf32>
    %49 = tpu.matmul %47, %48, %cst_30 {dimension_numbers = #tpu.dot_dimension_numbers<[1], [0], [0], [1], [0, 0, 1, 1], [], []>} : vector<128x128xf32>, vector<128x128xf32>, vector<128x128xf32> -> vector<128x128xf32>
    %c0_31 = arith.constant 0 : index
    %c0_32 = arith.constant 0 : index
    %50 = vector.load %arg11[%c0_31, %c0_32] : memref<1x128xf32, #tpu.memory_space<vmem>>, vector<1x128xf32>
    %51 = vector.broadcast %50 : vector<1x128xf32> to vector<128x128xf32>
    %52 = arith.addf %49, %51 : vector<128x128xf32>
    %c1 = arith.constant 1 : index
    %53 = memref.load %arg13[%c1] : memref<2xf32, #tpu.memory_space<smem>>
    %cst_33 = arith.constant 0.000000e+00 : f32
    %54 = vector.broadcast %cst_33 : f32 to vector<128x128xf32>
    %55 = arith.cmpf oge, %52, %54 : vector<128x128xf32>
    %56 = vector.broadcast %53 : f32 to vector<128x128xf32>
    %57 = arith.mulf %56, %52 : vector<128x128xf32>
    %58 = arith.select %55, %52, %57 : vector<128x128xi1>, vector<128x128xf32>
    %c0_34 = arith.constant 0 : index
    %c0_35 = arith.constant 0 : index
    %59 = vector.load %arg14[%c0_34, %c0_35] : memref<128x128xf32, #tpu.memory_space<vmem>>, vector<128x128xf32>
    tpu.vector_store %arg14[%c0_34, %c0_35], %58 {strides = array<i32>} : memref<128x128xf32, #tpu.memory_space<vmem>>, vector<128x128xf32>,
    return
  }
  func.func @transform_0(%arg0: i32) -> (i32, i32) {
    %c0_i32 = arith.constant 0 : i32
    %c0_i32_0 = arith.constant 0 : i32
    return %arg0, %c0_i32 : i32, i32
  }
  func.func @transform_1(%arg0: i32) -> (i32, i32) {
    %c0_i32 = arith.constant 0 : i32
    %c0_i32_0 = arith.constant 0 : i32
    %c0_i32_1 = arith.constant 0 : i32
    return %c0_i32, %c0_i32_0 : i32, i32
  }
  func.func @transform_2(%arg0: i32) -> (i32, i32) {
    %c0_i32 = arith.constant 0 : i32
    %c0_i32_0 = arith.constant 0 : i32
    %c0_i32_1 = arith.constant 0 : i32
    return %c0_i32, %c0_i32_0 : i32, i32
  }
  func.func @transform_3(%arg0: i32) -> (i32, i32) {
    %c0_i32 = arith.constant 0 : i32
    %c0_i32_0 = arith.constant 0 : i32
    %c0_i32_1 = arith.constant 0 : i32
    return %c0_i32, %c0_i32_0 : i32, i32
  }
  func.func @transform_4(%arg0: i32) -> (i32, i32) {
    %c0_i32 = arith.constant 0 : i32
    %c0_i32_0 = arith.constant 0 : i32
    %c0_i32_1 = arith.constant 0 : i32
    return %c0_i32, %c0_i32_0 : i32, i32
  }
  func.func @transform_5(%arg0: i32) -> (i32, i32) {
    %c0_i32 = arith.constant 0 : i32
    %c0_i32_0 = arith.constant 0 : i32
    %c0_i32_1 = arith.constant 0 : i32
    return %c0_i32, %c0_i32_0 : i32, i32
  }
  func.func @transform_6(%arg0: i32) -> (i32, i32) {
    %c0_i32 = arith.constant 0 : i32
    %c0_i32_0 = arith.constant 0 : i32
    %c0_i32_1 = arith.constant 0 : i32
    return %c0_i32, %c0_i32_0 : i32, i32
  }
  func.func @transform_7(%arg0: i32) -> (i32, i32) {
    %c0_i32 = arith.constant 0 : i32
    %c0_i32_0 = arith.constant 0 : i32
    %c0_i32_1 = arith.constant 0 : i32
    return %c0_i32, %c0_i32_0 : i32, i32
  }
  func.func @transform_8(%arg0: i32) -> (i32, i32) {
    %c0_i32 = arith.constant 0 : i32
    %c0_i32_0 = arith.constant 0 : i32
    %c0_i32_1 = arith.constant 0 : i32
    return %c0_i32, %c0_i32_0 : i32, i32
  }
  func.func @transform_9(%arg0: i32) -> (i32, i32) {
    %c0_i32 = arith.constant 0 : i32
    %c0_i32_0 = arith.constant 0 : i32
    %c0_i32_1 = arith.constant 0 : i32
    return %c0_i32, %c0_i32_0 : i32, i32
  }
  func.func @transform_10(%arg0: i32) -> (i32, i32) {
    %c0_i32 = arith.constant 0 : i32
    %c0_i32_0 = arith.constant 0 : i32
    %c0_i32_1 = arith.constant 0 : i32
    return %c0_i32, %c0_i32_0 : i32, i32
  }
  func.func @transform_11(%arg0: i32) -> (i32, i32) {
    %c0_i32 = arith.constant 0 : i32
    %c0_i32_0 = arith.constant 0 : i32
    %c0_i32_1 = arith.constant 0 : i32
    return %c0_i32, %c0_i32_0 : i32, i32
  }
  func.func @transform_12(%arg0: i32) -> i32 {
    %c0_i32 = arith.constant 0 : i32
    %c0_i32_0 = arith.constant 0 : i32
    return %c0_i32 : i32
  }
  func.func @transform_13(%arg0: i32) -> (i32, i32) {
    %c0_i32 = arith.constant 0 : i32
    %c0_i32_0 = arith.constant 0 : i32
    return %arg0, %c0_i32 : i32, i32
  }
}

module attributes {stable_mosaic.version = 11 : i64} {
  func.func @_mlp_block_kernel(%arg0: i32, %arg1: memref<128x128xf32, #tpu.memory_space<vmem>>, %arg2: memref<128x128xf32, #tpu.memory_space<vmem>>, %arg3: memref<1x128xf32, #tpu.memory_space<vmem>>, %arg4: memref<128x128xf32, #tpu.memory_space<vmem>>, %arg5: memref<1x128xf32, #tpu.memory_space<vmem>>, %arg6: memref<1x128xf32, #tpu.memory_space<vmem>>, %arg7: memref<1x128xf32, #tpu.memory_space<vmem>>, %arg8: memref<128x128xf32, #tpu.memory_space<vmem>>, %arg9: memref<1x128xf32, #tpu.memory_space<vmem>>, %arg10: memref<128x128xf32, #tpu.memory_space<vmem>>, %arg11: memref<1x128xf32, #tpu.memory_space<vmem>>, %arg12: memref<1x128xf32, #tpu.memory_space<vmem>>, %arg13: memref<2xf32, #tpu.memory_space<smem>>, %arg14: memref<128x128xf32, #tpu.memory_space<vmem>>) attributes {dimension_semantics = [#tpu.dimension_semantics<parallel>], iteration_bounds = array<i64: 1>, scalar_prefetch = 0 : i64, scratch_operands = 0 : i64, tpu.core_type = #tpu.core_type<tc>, window_params = [{transform_indices = @transform_0, window_bounds = array<i64: 128, 128>}, {pipeline_mode = #tpu.pipeline_mode<synchronous>, transform_indices = @transform_1, window_bounds = array<i64: 128, 128>}, {pipeline_mode = #tpu.pipeline_mode<synchronous>, transform_indices = @transform_2, window_bounds = array<i64: 1, 128>}, {pipeline_mode = #tpu.pipeline_mode<synchronous>, transform_indices = @transform_3, window_bounds = array<i64: 128, 128>}, {pipeline_mode = #tpu.pipeline_mode<synchronous>, transform_indices = @transform_4, window_bounds = array<i64: 1, 128>}, {pipeline_mode = #tpu.pipeline_mode<synchronous>, transform_indices = @transform_5, window_bounds = array<i64: 1, 128>}, {pipeline_mode = #tpu.pipeline_mode<synchronous>, transform_indices = @transform_6, window_bounds = array<i64: 1, 128>}, {pipeline_mode = #tpu.pipeline_mode<synchronous>, transform_indices = @transform_7, window_bounds = array<i64: 128, 128>}, {pipeline_mode = #tpu.pipeline_mode<synchronous>, transform_indices = @transform_8, window_bounds = array<i64: 1, 128>}, {pipeline_mode = #tpu.pipeline_mode<synchronous>, transform_indices = @transform_9, window_bounds = array<i64: 128, 128>}, {pipeline_mode = #tpu.pipeline_mode<synchronous>, transform_indices = @transform_10, window_bounds = array<i64: 1, 128>}, {pipeline_mode = #tpu.pipeline_mode<synchronous>, transform_indices = @transform_11, window_bounds = array<i64: 1, 128>}, {transform_indices = @transform_12, window_bounds = array<i64: 2>}, {transform_indices = @transform_13, window_bounds = array<i64: 128, 128>}]} {
    %c0 = arith.constant 0 : index
    %c0_0 = arith.constant 0 : index
    %0 = vector.load %arg1[%c0, %c0_0] : memref<128x128xf32, #tpu.memory_space<vmem>>, vector<128x128xf32>
    %c0_1 = arith.constant 0 : index
    %c0_2 = arith.constant 0 : index
    %1 = vector.load %arg2[%c0_1, %c0_2] : memref<128x128xf32, #tpu.memory_space<vmem>>, vector<128x128xf32>
    %cst = arith.constant dense<0.000000e+00> : vector<128x128xf32>
    %2 = tpu.matmul %0, %1, %cst {dimension_numbers = #tpu.dot_dimension_numbers<[1], [0], [0], [1], [0, 0, 1, 1], [], []>} : vector<128x128xf32>, vector<128x128xf32>, vector<128x128xf32> -> vector<128x128xf32>
    %c0_3 = arith.constant 0 : index
    %c0_4 = arith.constant 0 : index
    %3 = vector.load %arg3[%c0_3, %c0_4] : memref<1x128xf32, #tpu.memory_space<vmem>>, vector<1x128xf32>
    %4 = vector.broadcast %3 : vector<1x128xf32> to vector<128x128xf32>
    %5 = arith.addf %2, %4 : vector<128x128xf32>
    %c0_5 = arith.constant 0 : index
    %c0_6 = arith.constant 0 : index
    %6 = vector.load %arg4[%c0_5, %c0_6] : memref<128x128xf32, #tpu.memory_space<vmem>>, vector<128x128xf32>
    %cst_7 = arith.constant dense<0.000000e+00> : vector<128x128xf32>
    %7 = tpu.matmul %5, %6, %cst_7 {dimension_numbers = #tpu.dot_dimension_numbers<[1], [0], [0], [1], [0, 0, 1, 1], [], []>} : vector<128x128xf32>, vector<128x128xf32>, vector<128x128xf32> -> vector<128x128xf32>
    %c0_8 = arith.constant 0 : index
    %c0_9 = arith.constant 0 : index
    %8 = vector.load %arg5[%c0_8, %c0_9] : memref<1x128xf32, #tpu.memory_space<vmem>>, vector<1x128xf32>
    %9 = vector.broadcast %8 : vector<1x128xf32> to vector<128x128xf32>
    %10 = arith.addf %7, %9 : vector<128x128xf32>
    %cst_10 = arith.constant dense<0.000000e+00> : vector<128xf32>
    %11 = vector.multi_reduction <add>, %10, %cst_10 [1] : vector<128x128xf32> to vector<128xf32>
    %12 = vector.shape_cast %11 : vector<128xf32> to vector<128x1xf32>
    %cst_11 = arith.constant 3.125000e-02 : f32
    %13 = vector.broadcast %cst_11 : f32 to vector<128x1xf32>
    %14 = arith.mulf %12, %13 : vector<128x1xf32>
    %15 = vector.broadcast %14 : vector<128x1xf32> to vector<128x128xf32>
    %16 = arith.subf %10, %15 : vector<128x128xf32>
    %c0_12 = arith.constant 0 : index
    %c0_13 = arith.constant 0 : index
    %17 = vector.load %arg12[%c0_12, %c0_13] : memref<1x128xf32, #tpu.memory_space<vmem>>, vector<1x128xf32>
    %18 = vector.broadcast %17 : vector<1x128xf32> to vector<128x128xf32>
    %19 = arith.mulf %16, %18 : vector<128x128xf32>
    %20 = arith.mulf %19, %19 : vector<128x128xf32>
    %cst_14 = arith.constant dense<0.000000e+00> : vector<128xf32>
    %21 = vector.multi_reduction <add>, %20, %cst_14 [1] : vector<128x128xf32> to vector<128xf32>
    %22 = vector.shape_cast %21 : vector<128xf32> to vector<128x1xf32>
    %cst_15 = arith.constant 3.125000e-02 : f32
    %23 = vector.broadcast %cst_15 : f32 to vector<128x1xf32>
    %24 = arith.mulf %22, %23 : vector<128x1xf32>
    %cst_16 = arith.constant 9.99999974E-6 : f32
    %25 = vector.broadcast %cst_16 : f32 to vector<128x1xf32>
    %26 = arith.addf %24, %25 : vector<128x1xf32>
    %27 = math.rsqrt %26 : vector<128x1xf32>
    %c0_17 = arith.constant 0 : index
    %c0_18 = arith.constant 0 : index
    %28 = vector.load %arg6[%c0_17, %c0_18] : memref<1x128xf32, #tpu.memory_space<vmem>>, vector<1x128xf32>
    %29 = vector.broadcast %27 : vector<128x1xf32> to vector<128x128xf32>
    %30 = vector.broadcast %28 : vector<1x128xf32> to vector<128x128xf32>
    %31 = arith.mulf %29, %30 : vector<128x128xf32>
    %32 = arith.mulf %16, %31 : vector<128x128xf32>
    %c0_19 = arith.constant 0 : index
    %c0_20 = arith.constant 0 : index
    %33 = vector.load %arg7[%c0_19, %c0_20] : memref<1x128xf32, #tpu.memory_space<vmem>>, vector<1x128xf32>
    %34 = vector.broadcast %33 : vector<1x128xf32> to vector<128x128xf32>
    %35 = arith.addf %32, %34 : vector<128x128xf32>
    %c0_21 = arith.constant 0 : index
    %36 = memref.load %arg13[%c0_21] : memref<2xf32, #tpu.memory_space<smem>>
    %cst_22 = arith.constant 0.000000e+00 : f32
    %37 = vector.broadcast %cst_22 : f32 to vector<128x128xf32>
    %38 = arith.cmpf oge, %35, %37 : vector<128x128xf32>
    %39 = vector.broadcast %36 : f32 to vector<128x128xf32>
    %40 = arith.mulf %39, %35 : vector<128x128xf32>
    %41 = arith.select %38, %35, %40 : vector<128x128xi1>, vector<128x128xf32>
    %c0_23 = arith.constant 0 : index
    %c0_24 = arith.constant 0 : index
    %42 = vector.load %arg8[%c0_23, %c0_24] : memref<128x128xf32, #tpu.memory_space<vmem>>, vector<128x128xf32>
    %cst_25 = arith.constant dense<0.000000e+00> : vector<128x128xf32>
    %43 = tpu.matmul %41, %42, %cst_25 {dimension_numbers = #tpu.dot_dimension_numbers<[1], [0], [0], [1], [0, 0, 1, 1], [], []>} : vector<128x128xf32>, vector<128x128xf32>, vector<128x128xf32> -> vector<128x128xf32>
    %c0_26 = arith.constant 0 : index
    %c0_27 = arith.constant 0 : index
    %44 = vector.load %arg9[%c0_26, %c0_27] : memref<1x128xf32, #tpu.memory_space<vmem>>, vector<1x128xf32>
    %45 = vector.broadcast %44 : vector<1x128xf32> to vector<128x128xf32>
    %46 = arith.addf %43, %45 : vector<128x128xf32>
    %47 = arith.addf %46, %5 : vector<128x128xf32>
    %c0_28 = arith.constant 0 : index
    %c0_29 = arith.constant 0 : index
    %48 = vector.load %arg10[%c0_28, %c0_29] : memref<128x128xf32, #tpu.memory_space<vmem>>, vector<128x128xf32>
    %cst_30 = arith.constant dense<0.000000e+00> : vector<128x128xf32>
    %49 = tpu.matmul %47, %48, %cst_30 {dimension_numbers = #tpu.dot_dimension_numbers<[1], [0], [0], [1], [0, 0, 1, 1], [], []>} : vector<128x128xf32>, vector<128x128xf32>, vector<128x128xf32> -> vector<128x128xf32>
    %c0_31 = arith.constant 0 : index
    %c0_32 = arith.constant 0 : index
    %50 = vector.load %arg11[%c0_31, %c0_32] : memref<1x128xf32, #tpu.memory_space<vmem>>, vector<1x128xf32>
    %51 = vector.broadcast %50 : vector<1x128xf32> to vector<128x128xf32>
    %52 = arith.addf %49, %51 : vector<128x128xf32>
    %c1 = arith.constant 1 : index
    %53 = memref.load %arg13[%c1] : memref<2xf32, #tpu.memory_space<smem>>
    %cst_33 = arith.constant 0.000000e+00 : f32
    %54 = vector.broadcast %cst_33 : f32 to vector<128x128xf32>
    %55 = arith.cmpf oge, %52, %54 : vector<128x128xf32>
    %56 = vector.broadcast %53 : f32 to vector<128x128xf32>
    %57 = arith.mulf %56, %52 : vector<128x128xf32>
    %58 = arith.select %55, %52, %57 : vector<128x128xi1>, vector<128x128xf32>
    %c0_34 = arith.constant 0 : index
    %c0_35 = arith.constant 0 : index
    %59 = vector.load %arg14[%c0_34, %c0_35] : memref<128x128xf32, #tpu.memory_space<vmem>>, vector<128x128xf32>
    tpu.vector_store %arg14[%c0_34, %c0_35], %58 {strides = array<i32>} : memref<128x128xf32, #tpu.memory_space<vmem>>, vector<128x128xf32>,
    return
  }
  func.func @transform_0(%arg0: i32) -> (i32, i32) {
    %c0_i32 = arith.constant 0 : i32
    %c0_i32_0 = arith.constant 0 : i32
    return %arg0, %c0_i32 : i32, i32
  }
  func.func @transform_1(%arg0: i32) -> (i32, i32) {
    %c0_i32 = arith.constant 0 : i32
    %c0_i32_0 = arith.constant 0 : i32
    %c0_i32_1 = arith.constant 0 : i32
    return %c0_i32, %c0_i32_0 : i32, i32
  }
  func.func @transform_2(%arg0: i32) -> (i32, i32) {
    %c0_i32 = arith.constant 0 : i32
    %c0_i32_0 = arith.constant 0 : i32
    %c0_i32_1 = arith.constant 0 : i32
    return %c0_i32, %c0_i32_0 : i32, i32
  }
  func.func @transform_3(%arg0: i32) -> (i32, i32) {
    %c0_i32 = arith.constant 0 : i32
    %c0_i32_0 = arith.constant 0 : i32
    %c0_i32_1 = arith.constant 0 : i32
    return %c0_i32, %c0_i32_0 : i32, i32
  }
  func.func @transform_4(%arg0: i32) -> (i32, i32) {
    %c0_i32 = arith.constant 0 : i32
    %c0_i32_0 = arith.constant 0 : i32
    %c0_i32_1 = arith.constant 0 : i32
    return %c0_i32, %c0_i32_0 : i32, i32
  }
  func.func @transform_5(%arg0: i32) -> (i32, i32) {
    %c0_i32 = arith.constant 0 : i32
    %c0_i32_0 = arith.constant 0 : i32
    %c0_i32_1 = arith.constant 0 : i32
    return %c0_i32, %c0_i32_0 : i32, i32
  }
  func.func @transform_6(%arg0: i32) -> (i32, i32) {
    %c0_i32 = arith.constant 0 : i32
    %c0_i32_0 = arith.constant 0 : i32
    %c0_i32_1 = arith.constant 0 : i32
    return %c0_i32, %c0_i32_0 : i32, i32
  }
  func.func @transform_7(%arg0: i32) -> (i32, i32) {
    %c0_i32 = arith.constant 0 : i32
    %c0_i32_0 = arith.constant 0 : i32
    %c0_i32_1 = arith.constant 0 : i32
    return %c0_i32, %c0_i32_0 : i32, i32
  }
  func.func @transform_8(%arg0: i32) -> (i32, i32) {
    %c0_i32 = arith.constant 0 : i32
    %c0_i32_0 = arith.constant 0 : i32
    %c0_i32_1 = arith.constant 0 : i32
    return %c0_i32, %c0_i32_0 : i32, i32
  }
  func.func @transform_9(%arg0: i32) -> (i32, i32) {
    %c0_i32 = arith.constant 0 : i32
    %c0_i32_0 = arith.constant 0 : i32
    %c0_i32_1 = arith.constant 0 : i32
    return %c0_i32, %c0_i32_0 : i32, i32
  }
  func.func @transform_10(%arg0: i32) -> (i32, i32) {
    %c0_i32 = arith.constant 0 : i32
    %c0_i32_0 = arith.constant 0 : i32
    %c0_i32_1 = arith.constant 0 : i32
    return %c0_i32, %c0_i32_0 : i32, i32
  }
  func.func @transform_11(%arg0: i32) -> (i32, i32) {
    %c0_i32 = arith.constant 0 : i32
    %c0_i32_0 = arith.constant 0 : i32
    %c0_i32_1 = arith.constant 0 : i32
    return %c0_i32, %c0_i32_0 : i32, i32
  }
  func.func @transform_12(%arg0: i32) -> i32 {
    %c0_i32 = arith.constant 0 : i32
    %c0_i32_0 = arith.constant 0 : i32
    return %c0_i32 : i32
  }
  func.func @transform_13(%arg0: i32) -> (i32, i32) {
    %c0_i32 = arith.constant 0 : i32
    %c0_i32_0 = arith.constant 0 : i32
    return %arg0, %c0_i32 : i32, i32
  }
}

</mosaic_0001>

<llo_original>
// kernel: _mlp_block_padded.1
$region0: #{_mlp_block_padded.1}
  #allocation0 [shape = 'u32[]', space=smem, size = 0x4, offset = 0x4, fixed_abs, tag = 'smem constant byte address 0x4 - core index']
  #allocation1 [shape = 'u32[144,128]{1,0:T(1,128)}', space=vmem, size = 0x12000, scoped, tag = 'internal scratch']
  %s0 = inlined_call_operand.vmem [shape: f32[128,128], index: 0, kind: input, shape index: {}]
  %s1 = inlined_call_operand.vmem [shape: f32[128,128], index: 1, kind: input, shape index: {}]
  %s2 = inlined_call_operand.vmem [shape: f32[1,128], index: 2, kind: input, shape index: {}]
  %s3 = inlined_call_operand.vmem [shape: f32[128,128], index: 3, kind: input, shape index: {}]
  %s4 = inlined_call_operand.vmem [shape: f32[1,128], index: 4, kind: input, shape index: {}]
  %s5 = inlined_call_operand.vmem [shape: f32[1,128], index: 5, kind: input, shape index: {}]
  %s6 = inlined_call_operand.vmem [shape: f32[1,128], index: 6, kind: input, shape index: {}]
  %s7 = inlined_call_operand.vmem [shape: f32[128,128], index: 7, kind: input, shape index: {}]
  %s8 = inlined_call_operand.vmem [shape: f32[1,128], index: 8, kind: input, shape index: {}]
  %s9 = inlined_call_operand.hbm [shape: f32[128,128], index: 9, kind: input, shape index: {}]
  %s10 = inlined_call_operand.vmem [shape: f32[1,128], index: 10, kind: input, shape index: {}]
  %s11 = inlined_call_operand.vmem [shape: f32[1,128], index: 11, kind: input, shape index: {}]
  %s12 = inlined_call_operand.vmem [shape: f32[2], index: 12, kind: input, shape index: {}]
  %s13 = inlined_call_operand.vmem [shape: f32[128,128], index: 13, kind: output, shape index: {}]
  %s14 = sld [smem:[#allocation0]]
  $region70: #{_mlp_block_padded.1} parent=0
    _
  %s16 = ssub.s32 1, %s14
  %s17 = scalar_select 0, %s16, %s14
  $region1: #{_mlp_block_padded.1} parent=0
    #allocation2 [shape = 'u8[65536]{0}', space=vmem, size = 0x10000, scoped, tag = 'input window, operand 9, single buffered']
    #allocation3 [shape = 's32[1]{0}', space=sflag, size = 0x4, scoped, tag = 'scoped memory for _mlp_block_padded.1']
    #allocation4 [shape = 's32[1]{0}', space=sflag, size = 0x4, scoped, tag = 'scoped memory for _mlp_block_padded.1']
    #allocation5 [shape = 'u8[512]{0}', space=smem, size = 0x200, scoped, tag = 'input window, operand 12, single buffered']
    %18 = vsyncpa [#allocation3], 0
    %19 = vsyncpa [#allocation4], 0
    // Predicated region
    $region2: #{_mlp_block_padded.1} parent=1 // pred_check
      _
    $region3: #{_mlp_block_padded.1} parent=1 // pred_check_branch
      %21 = sbr.rel (0) target = $region5
    $region4: #{_mlp_block_padded.1} parent=1 // pred_region
      _
    $region5: #{_mlp_block_padded.1} parent=1 // pred_fallthru
      _
    // Predicated region
    $region6: #{_mlp_block_padded.1} parent=1 // pred_check
      _
    $region7: #{_mlp_block_padded.1} parent=1 // pred_check_branch
      %23 = sbr.rel (0) target = $region9
    $region8: #{_mlp_block_padded.1} parent=1 // pred_region
      _
    $region9: #{_mlp_block_padded.1} parent=1 // pred_fallthru
      _
    // Predicated region
    $region10: #{_mlp_block_padded.1} parent=1 // pred_check
      _
    $region11: #{_mlp_block_padded.1} parent=1 // pred_check_branch
      %25 = sbr.rel (0) target = $region13
    $region12: #{_mlp_block_padded.1} parent=1 // pred_region
      _
    $region13: #{_mlp_block_padded.1} parent=1 // pred_fallthru
      _
    // Predicated region
    $region14: #{_mlp_block_padded.1} parent=1 // pred_check
      _
    $region15: #{_mlp_block_padded.1} parent=1 // pred_check_branch
      %27 = sbr.rel (0) target = $region17
    $region16: #{_mlp_block_padded.1} parent=1 // pred_region
      _
    $region17: #{_mlp_block_padded.1} parent=1 // pred_fallthru
      _
    // Predicated region
    $region18: #{_mlp_block_padded.1} parent=1 // pred_check
      _
    $region19: #{_mlp_block_padded.1} parent=1 // pred_check_branch
      %29 = sbr.rel (0) target = $region21
    $region20: #{_mlp_block_padded.1} parent=1 // pred_region
      _
    $region21: #{_mlp_block_padded.1} parent=1 // pred_fallthru
      _
    // Predicated region
    $region22: #{_mlp_block_padded.1} parent=1 // pred_check
      _
    $region23: #{_mlp_block_padded.1} parent=1 // pred_check_branch
      %31 = sbr.rel (0) target = $region25
    $region24: #{_mlp_block_padded.1} parent=1 // pred_region
      _
    $region25: #{_mlp_block_padded.1} parent=1 // pred_fallthru
      _
    // Predicated region
    $region26: #{_mlp_block_padded.1} parent=1 // pred_check
      _
    $region27: #{_mlp_block_padded.1} parent=1 // pred_check_branch
      %33 = sbr.rel (0) target = $region29
    $region28: #{_mlp_block_padded.1} parent=1 // pred_region
      _
    $region29: #{_mlp_block_padded.1} parent=1 // pred_fallthru
      _
    // Predicated region
    $region30: #{_mlp_block_padded.1} parent=1 // pred_check
      _
    $region31: #{_mlp_block_padded.1} parent=1 // pred_check_branch
      %35 = sbr.rel (0) target = $region33
    $region32: #{_mlp_block_padded.1} parent=1 // pred_region
      _
    $region33: #{_mlp_block_padded.1} parent=1 // pred_fallthru
      _
    // Predicated region
    $region34: #{_mlp_block_padded.1} parent=1 // pred_check
      _
    $region35: #{_mlp_block_padded.1} parent=1 // pred_check_branch
      %37 = sbr.rel (0) target = $region37
    $region36: #{_mlp_block_padded.1} parent=1 // pred_region
      _
    $region37: #{_mlp_block_padded.1} parent=1 // pred_fallthru
      _
    // Predicated region
    $region38: #{_mlp_block_padded.1} parent=1 // pred_check
      _
    $region39: #{_mlp_block_padded.1} parent=1 // pred_check_branch
      %39 = sbr.rel (0) target = $region41
    $region40: #{_mlp_block_padded.1} parent=1 // pred_region
      %s41 = ssub.s32 2048, 2048
      %42 = vsyncadd [#allocation3], %s41
      %s43 = sshll.u32 [#allocation2], 4
      %s44 = int_to_ptr.vmem [resolvable:$true] %s43
      %49 = dma.hbm_to_vmem [thread:$0]  %s9, 2048, %s44, [#allocation3], 128, 128, 8
    $region41: #{_mlp_block_padded.1} parent=1 // pred_fallthru
      _
    // Predicated region
    $region42: #{_mlp_block_padded.1} parent=1 // pred_check
      _
    $region43: #{_mlp_block_padded.1} parent=1 // pred_check_branch
      %51 = sbr.rel (0) target = $region45
    $region44: #{_mlp_block_padded.1} parent=1 // pred_region
      _
    $region45: #{_mlp_block_padded.1} parent=1 // pred_fallthru
      _
    // Predicated region
    $region46: #{_mlp_block_padded.1} parent=1 // pred_check
      _
    $region47: #{_mlp_block_padded.1} parent=1 // pred_check_branch
      %53 = sbr.rel (0) target = $region49
    $region48: #{_mlp_block_padded.1} parent=1 // pred_region
      _
    $region49: #{_mlp_block_padded.1} parent=1 // pred_fallthru
      _
    // Predicated region
    $region50: #{_mlp_block_padded.1} parent=1 // pred_check
      _
    $region51: #{_mlp_block_padded.1} parent=1 // pred_check_branch
      %55 = sbr.rel (0) target = $region53
    $region52: #{_mlp_block_padded.1} parent=1 // pred_region
      %s57 = ssub.s32 16, 16
      %58 = vsyncadd [#allocation4], %s57
      %s60 = sshll.u32 %s12, 4
      %s61 = int_to_ptr.vmem [resolvable:$true] %s60
      %63 = dma.vmem_to_smem %s61, 16, [#allocation5], [#allocation4]
    $region53: #{_mlp_block_padded.1} parent=1 // pred_fallthru
      _
    // Predicated region
    $region54: #{_mlp_block_padded.1} parent=1 // pred_check
      _
    $region55: #{_mlp_block_padded.1} parent=1 // pred_check_branch
      %65 = sbr.rel (0) target = $region57
    $region56: #{_mlp_block_padded.1} parent=1 // pred_region
      %66 = dma.done [#allocation3], 2048
    $region57: #{_mlp_block_padded.1} parent=1 // pred_fallthru
      _
    // Predicated region
    $region58: #{_mlp_block_padded.1} parent=1 // pred_check
      _
    $region59: #{_mlp_block_padded.1} parent=1 // pred_check_branch
      %68 = sbr.rel (0) target = $region61
    $region60: #{_mlp_block_padded.1} parent=1 // pred_region
      %69 = dma.done [#allocation4], 16
    $region61: #{_mlp_block_padded.1} parent=1 // pred_fallthru
      _
    %70 = sfence
    %v71 = vld [vmem:[%s0] sm:$0xff]
    %v72 = vld [vmem:[%s0 + $0x8] sm:$0xff]
    %v73 = vld [vmem:[%s0 + $0x10] sm:$0xff]
    %v74 = vld [vmem:[%s0 + $0x18] sm:$0xff]
    %v75 = vld [vmem:[%s0 + $0x20] sm:$0xff]
    %v76 = vld [vmem:[%s0 + $0x28] sm:$0xff]
    %v77 = vld [vmem:[%s0 + $0x30] sm:$0xff]
    %v78 = vld [vmem:[%s0 + $0x38] sm:$0xff]
    %v79 = vld [vmem:[%s0 + $0x40] sm:$0xff]
    %v80 = vld [vmem:[%s0 + $0x48] sm:$0xff]
    %v81 = vld [vmem:[%s0 + $0x50] sm:$0xff]
    %v82 = vld [vmem:[%s0 + $0x58] sm:$0xff]
    %v83 = vld [vmem:[%s0 + $0x60] sm:$0xff]
    %v84 = vld [vmem:[%s0 + $0x68] sm:$0xff]
    %v85 = vld [vmem:[%s0 + $0x70] sm:$0xff]
    %v86 = vld [vmem:[%s0 + $0x78] sm:$0xff]
    %v87 = vld [vmem:[%s1] sm:$0xff]
    %v88 = vld [vmem:[%s1 + $0x8] sm:$0xff]
    %v89 = vld [vmem:[%s1 + $0x10] sm:$0xff]
    %v90 = vld [vmem:[%s1 + $0x18] sm:$0xff]
    %v91 = vld [vmem:[%s1 + $0x20] sm:$0xff]
    %v92 = vld [vmem:[%s1 + $0x28] sm:$0xff]
    %v93 = vld [vmem:[%s1 + $0x30] sm:$0xff]
    %v94 = vld [vmem:[%s1 + $0x38] sm:$0xff]
    %v95 = vld [vmem:[%s1 + $0x40] sm:$0xff]
    %v96 = vld [vmem:[%s1 + $0x48] sm:$0xff]
    %v97 = vld [vmem:[%s1 + $0x50] sm:$0xff]
    %v98 = vld [vmem:[%s1 + $0x58] sm:$0xff]
    %v99 = vld [vmem:[%s1 + $0x60] sm:$0xff]
    %v100 = vld [vmem:[%s1 + $0x68] sm:$0xff]
    %v101 = vld [vmem:[%s1 + $0x70] sm:$0xff]
    %v102 = vld [vmem:[%s1 + $0x78] sm:$0xff]
    %v103 = vld [vmem:[%s2] sm:$0x1]
    %v105 = vlaneseq
    %v106 = vshrl.u32 %v105, 7
    %v107 = vsub.s32 0, %v106
    %v108 = vrot.slane %v103, %v107
    %110 = vmatprep.subr.mxu0 0.0
    %111 = vmatpush1.msra.mxu0 %v87
    %112 = vmatprep.subr.mxu0 0.0
    %113 = vmatpush1.msra.mxu0 %v88
    %114 = vmatprep.subr.mxu0 0.0
    %115 = vmatpush1.msra.mxu0 %v89
    %116 = vmatprep.subr.mxu0 0.0
    %117 = vmatpush1.msra.mxu0 %v90
    %118 = vmatprep.subr.mxu0 0.0
    %119 = vmatpush1.msra.mxu0 %v91
    %120 = vmatprep.subr.mxu0 0.0
    %121 = vmatpush1.msra.mxu0 %v92
    %122 = vmatprep.subr.mxu0 0.0
    %123 = vmatpush1.msra.mxu0 %v93
    %124 = vmatprep.subr.mxu0 0.0
    %125 = vmatpush1.msra.mxu0 %v94
    %126 = vmatprep.subr.mxu0 0.0
    %127 = vmatpush1.msra.mxu0 %v95
    %128 = vmatprep.subr.mxu0 0.0
    %129 = vmatpush1.msra.mxu0 %v96
    %130 = vmatprep.subr.mxu0 0.0
    %131 = vmatpush1.msra.mxu0 %v97
    %132 = vmatprep.subr.mxu0 0.0
    %133 = vmatpush1.msra.mxu0 %v98
    %134 = vmatprep.subr.mxu0 0.0
    %135 = vmatpush1.msra.mxu0 %v99
    %136 = vmatprep.subr.mxu0 0.0
    %137 = vmatpush1.msra.mxu0 %v100
    %138 = vmatprep.subr.mxu0 0.0
    %139 = vmatpush1.msra.mxu0 %v101
    %140 = vmatprep.subr.mxu0 0.0
    %141 = vmatpush1.msra.mxu0 %v102
    %142 = vmatprep.subr.mxu0 0.0
    %143 = vmatpush1.msra.mxu0 0.0
    %144 = vmatprep.subr.mxu0 0.0
    %145 = vmatpush1.msra.mxu0 0.0
    %146 = vmatprep.subr.mxu0 0.0
    %147 = vmatpush1.msra.mxu0 0.0
    %148 = vmatprep.subr.mxu0 0.0
    %149 = vmatpush1.msra.mxu0 0.0
    %150 = vmatprep.subr.mxu0 0.0
    %151 = vmatpush1.msra.mxu0 0.0
    %152 = vmatprep.subr.mxu0 0.0
    %153 = vmatpush1.msra.mxu0 0.0
    %154 = vmatprep.subr.mxu0 0.0
    %155 = vmatpush1.msra.mxu0 0.0
    %156 = vmatprep.subr.mxu0 0.0
    %157 = vmatpush1.msra.mxu0 0.0
    %158 = vmatprep.subr.mxu0 0.0
    %159 = vmatpush1.msra.mxu0 0.0
    %160 = vmatprep.subr.mxu0 0.0
    %161 = vmatpush1.msra.mxu0 0.0
    %162 = vmatprep.subr.mxu0 0.0
    %163 = vmatpush1.msra.mxu0 0.0
    %164 = vmatprep.subr.mxu0 0.0
    %165 = vmatpush1.msra.mxu0 0.0
    %166 = vmatprep.subr.mxu0 0.0
    %167 = vmatpush1.msra.mxu0 0.0
    %168 = vmatprep.subr.mxu0 0.0
    %169 = vmatpush1.msra.mxu0 0.0
    %170 = vmatprep.subr.mxu0 0.0
    %171 = vmatpush1.msra.mxu0 0.0
    %172 = vmatprep.subr.mxu0 0.0
    %173 = vmatpush1.msra.mxu0 0.0
    %174 = vmatprep.mubr.f32.mxu0 0.0
    %175 = vmatmul.mubr.f32.gmra.mrb[0].mxu0 %v71
    %v176 = vpop.f32.mrb[0].mxu0
    %v177 = vadd.f32 %v108, %v176
    %v178 = vpop.f32.mrb[0].mxu0
    %179 = vmatprep.mubr.f32.mxu0 0.0
    %180 = vmatmul.mubr.f32.gmra.mrb[0].mxu0 %v72
    %v181 = vpop.f32.mrb[0].mxu0
    %v182 = vadd.f32 %v108, %v181
    %v183 = vpop.f32.mrb[0].mxu0
    %184 = vmatprep.mubr.f32.mxu0 0.0
    %185 = vmatmul.mubr.f32.gmra.mrb[0].mxu0 %v73
    %v186 = vpop.f32.mrb[0].mxu0
    %v187 = vadd.f32 %v108, %v186
    %v188 = vpop.f32.mrb[0].mxu0
    %189 = vmatprep.mubr.f32.mxu0 0.0
    %190 = vmatmul.mubr.f32.gmra.mrb[0].mxu0 %v74
    %v191 = vpop.f32.mrb[0].mxu0
    %v192 = vadd.f32 %v108, %v191
    %v193 = vpop.f32.mrb[0].mxu0
    %194 = vmatprep.mubr.f32.mxu0 0.0
    %195 = vmatmul.mubr.f32.gmra.mrb[0].mxu0 %v75
    %v196 = vpop.f32.mrb[0].mxu0
    %v197 = vadd.f32 %v108, %v196
    %v198 = vpop.f32.mrb[0].mxu0
    %199 = vmatprep.mubr.f32.mxu0 0.0
    %200 = vmatmul.mubr.f32.gmra.mrb[0].mxu0 %v76
    %v201 = vpop.f32.mrb[0].mxu0
    %v202 = vadd.f32 %v108, %v201
    %v203 = vpop.f32.mrb[0].mxu0
    %204 = vmatprep.mubr.f32.mxu0 0.0
    %205 = vmatmul.mubr.f32.gmra.mrb[0].mxu0 %v77
    %v206 = vpop.f32.mrb[0].mxu0
    %v207 = vadd.f32 %v108, %v206
    %v208 = vpop.f32.mrb[0].mxu0
    %209 = vmatprep.mubr.f32.mxu0 0.0
    %210 = vmatmul.mubr.f32.gmra.mrb[0].mxu0 %v78
    %v211 = vpop.f32.mrb[0].mxu0
    %v212 = vadd.f32 %v108, %v211
    %v213 = vpop.f32.mrb[0].mxu0
    %214 = vmatprep.mubr.f32.mxu0 0.0
    %215 = vmatmul.mubr.f32.gmra.mrb[0].mxu0 %v79
    %v216 = vpop.f32.mrb[0].mxu0
    %v217 = vadd.f32 %v108, %v216
    %v218 = vpop.f32.mrb[0].mxu0
    %219 = vmatprep.mubr.f32.mxu0 0.0
    %220 = vmatmul.mubr.f32.gmra.mrb[0].mxu0 %v80
    %v221 = vpop.f32.mrb[0].mxu0
    %v222 = vadd.f32 %v108, %v221
    %v223 = vpop.f32.mrb[0].mxu0
    %224 = vmatprep.mubr.f32.mxu0 0.0
    %225 = vmatmul.mubr.f32.gmra.mrb[0].mxu0 %v81
    %v226 = vpop.f32.mrb[0].mxu0
    %v227 = vadd.f32 %v108, %v226
    %v228 = vpop.f32.mrb[0].mxu0
    %229 = vmatprep.mubr.f32.mxu0 0.0
    %230 = vmatmul.mubr.f32.gmra.mrb[0].mxu0 %v82
    %v231 = vpop.f32.mrb[0].mxu0
    %v232 = vadd.f32 %v108, %v231
    %v233 = vpop.f32.mrb[0].mxu0
    %234 = vmatprep.mubr.f32.mxu0 0.0
    %235 = vmatmul.mubr.f32.gmra.mrb[0].mxu0 %v83
    %v236 = vpop.f32.mrb[0].mxu0
    %v237 = vadd.f32 %v108, %v236
    %v238 = vpop.f32.mrb[0].mxu0
    %239 = vmatprep.mubr.f32.mxu0 0.0
    %240 = vmatmul.mubr.f32.gmra.mrb[0].mxu0 %v84
    %v241 = vpop.f32.mrb[0].mxu0
    %v242 = vadd.f32 %v108, %v241
    %v243 = vpop.f32.mrb[0].mxu0
    %244 = vmatprep.mubr.f32.mxu0 0.0
    %245 = vmatmul.mubr.f32.gmra.mrb[0].mxu0 %v85
    %v246 = vpop.f32.mrb[0].mxu0
    %v247 = vadd.f32 %v108, %v246
    %v248 = vpop.f32.mrb[0].mxu0
    %249 = vmatprep.mubr.f32.mxu0 0.0
    %250 = vmatmul.mubr.f32.gmra.mrb[0].mxu0 %v86
    %v251 = vpop.f32.mrb[0].mxu0
    %v252 = vadd.f32 %v108, %v251
    %v253 = vpop.f32.mrb[0].mxu0
    %254 = vdwg.mxu0
    %v255 = vld [vmem:[%s3] sm:$0xff]
    %v256 = vld [vmem:[%s3 + $0x8] sm:$0xff]
    %v257 = vld [vmem:[%s3 + $0x10] sm:$0xff]
    %v258 = vld [vmem:[%s3 + $0x18] sm:$0xff]
    %v259 = vld [vmem:[%s3 + $0x20] sm:$0xff]
    %v260 = vld [vmem:[%s3 + $0x28] sm:$0xff]
    %v261 = vld [vmem:[%s3 + $0x30] sm:$0xff]
    %v262 = vld [vmem:[%s3 + $0x38] sm:$0xff]
    %v263 = vld [vmem:[%s3 + $0x40] sm:$0xff]
    %v264 = vld [vmem:[%s3 + $0x48] sm:$0xff]
    %v265 = vld [vmem:[%s3 + $0x50] sm:$0xff]
    %v266 = vld [vmem:[%s3 + $0x58] sm:$0xff]
    %v267 = vld [vmem:[%s3 + $0x60] sm:$0xff]
    %v268 = vld [vmem:[%s3 + $0x68] sm:$0xff]
    %v269 = vld [vmem:[%s3 + $0x70] sm:$0xff]
    %v270 = vld [vmem:[%s3 + $0x78] sm:$0xff]
    %v271 = vld [vmem:[%s4] sm:$0x1]
    %v273 = vlaneseq
    %v274 = vshrl.u32 %v273, 7
    %v275 = vsub.s32 0, %v274
    %v276 = vrot.slane %v271, %v275
    %278 = vmatprep.subr.mxu0 0.0
    %279 = vmatpush1.msra.mxu0 %v255
    %280 = vmatprep.subr.mxu0 0.0
    %281 = vmatpush1.msra.mxu0 %v256
    %282 = vmatprep.subr.mxu0 0.0
    %283 = vmatpush1.msra.mxu0 %v257
    %284 = vmatprep.subr.mxu0 0.0
    %285 = vmatpush1.msra.mxu0 %v258
    %286 = vmatprep.subr.mxu0 0.0
    %287 = vmatpush1.msra.mxu0 %v259
    %288 = vmatprep.subr.mxu0 0.0
    %289 = vmatpush1.msra.mxu0 %v260
    %290 = vmatprep.subr.mxu0 0.0
    %291 = vmatpush1.msra.mxu0 %v261
    %292 = vmatprep.subr.mxu0 0.0
    %293 = vmatpush1.msra.mxu0 %v262
    %294 = vmatprep.subr.mxu0 0.0
    %295 = vmatpush1.msra.mxu0 %v263
    %296 = vmatprep.subr.mxu0 0.0
    %297 = vmatpush1.msra.mxu0 %v264
    %298 = vmatprep.subr.mxu0 0.0
    %299 = vmatpush1.msra.mxu0 %v265
    %300 = vmatprep.subr.mxu0 0.0
    %301 = vmatpush1.msra.mxu0 %v266
    %302 = vmatprep.subr.mxu0 0.0
    %303 = vmatpush1.msra.mxu0 %v267
    %304 = vmatprep.subr.mxu0 0.0
    %305 = vmatpush1.msra.mxu0 %v268
    %306 = vmatprep.subr.mxu0 0.0
    %307 = vmatpush1.msra.mxu0 %v269
    %308 = vmatprep.subr.mxu0 0.0
    %309 = vmatpush1.msra.mxu0 %v270
    %310 = vmatprep.subr.mxu0 0.0
    %311 = vmatpush1.msra.mxu0 0.0
    %312 = vmatprep.subr.mxu0 0.0
    %313 = vmatpush1.msra.mxu0 0.0
    %314 = vmatprep.subr.mxu0 0.0
    %315 = vmatpush1.msra.mxu0 0.0
    %316 = vmatprep.subr.mxu0 0.0
    %317 = vmatpush1.msra.mxu0 0.0
    %318 = vmatprep.subr.mxu0 0.0
    %319 = vmatpush1.msra.mxu0 0.0
    %320 = vmatprep.subr.mxu0 0.0
    %321 = vmatpush1.msra.mxu0 0.0
    %322 = vmatprep.subr.mxu0 0.0
    %323 = vmatpush1.msra.mxu0 0.0
    %324 = vmatprep.subr.mxu0 0.0
    %325 = vmatpush1.msra.mxu0 0.0
    %326 = vmatprep.subr.mxu0 0.0
    %327 = vmatpush1.msra.mxu0 0.0
    %328 = vmatprep.subr.mxu0 0.0
    %329 = vmatpush1.msra.mxu0 0.0
    %330 = vmatprep.subr.mxu0 0.0
    %331 = vmatpush1.msra.mxu0 0.0
    %332 = vmatprep.subr.mxu0 0.0
    %333 = vmatpush1.msra.mxu0 0.0
    %334 = vmatprep.subr.mxu0 0.0
    %335 = vmatpush1.msra.mxu0 0.0
    %336 = vmatprep.subr.mxu0 0.0
    %337 = vmatpush1.msra.mxu0 0.0
    %338 = vmatprep.subr.mxu0 0.0
    %339 = vmatpush1.msra.mxu0 0.0
    %340 = vmatprep.subr.mxu0 0.0
    %341 = vmatpush1.msra.mxu0 0.0
    %342 = vmatprep.mubr.f32.mxu0 0.0
    %343 = vmatmul.mubr.f32.gmra.mrb[0].mxu0 %v177
    %v344 = vpop.f32.mrb[0].mxu0
    %v345 = vadd.f32 %v276, %v344
    %v346 = vpop.f32.mrb[0].mxu0
    %347 = vmatprep.mubr.f32.mxu0 0.0
    %348 = vmatmul.mubr.f32.gmra.mrb[0].mxu0 %v182
    %v349 = vpop.f32.mrb[0].mxu0
    %v350 = vadd.f32 %v276, %v349
    %v351 = vpop.f32.mrb[0].mxu0
    %352 = vmatprep.mubr.f32.mxu0 0.0
    %353 = vmatmul.mubr.f32.gmra.mrb[0].mxu0 %v187
    %v354 = vpop.f32.mrb[0].mxu0
    %v355 = vadd.f32 %v276, %v354
    %v356 = vpop.f32.mrb[0].mxu0
    %357 = vmatprep.mubr.f32.mxu0 0.0
    %358 = vmatmul.mubr.f32.gmra.mrb[0].mxu0 %v192
    %v359 = vpop.f32.mrb[0].mxu0
    %v360 = vadd.f32 %v276, %v359
    %v361 = vpop.f32.mrb[0].mxu0
    %362 = vmatprep.mubr.f32.mxu0 0.0
    %363 = vmatmul.mubr.f32.gmra.mrb[0].mxu0 %v197
    %v364 = vpop.f32.mrb[0].mxu0
    %v365 = vadd.f32 %v276, %v364
    %v366 = vpop.f32.mrb[0].mxu0
    %367 = vmatprep.mubr.f32.mxu0 0.0
    %368 = vmatmul.mubr.f32.gmra.mrb[0].mxu0 %v202
    %v369 = vpop.f32.mrb[0].mxu0
    %v370 = vadd.f32 %v276, %v369
    %v371 = vpop.f32.mrb[0].mxu0
    %372 = vmatprep.mubr.f32.mxu0 0.0
    %373 = vmatmul.mubr.f32.gmra.mrb[0].mxu0 %v207
    %v374 = vpop.f32.mrb[0].mxu0
    %v375 = vadd.f32 %v276, %v374
    %v376 = vpop.f32.mrb[0].mxu0
    %377 = vmatprep.mubr.f32.mxu0 0.0
    %378 = vmatmul.mubr.f32.gmra.mrb[0].mxu0 %v212
    %v379 = vpop.f32.mrb[0].mxu0
    %v380 = vadd.f32 %v276, %v379
    %v381 = vpop.f32.mrb[0].mxu0
    %382 = vmatprep.mubr.f32.mxu0 0.0
    %383 = vmatmul.mubr.f32.gmra.mrb[0].mxu0 %v217
    %v384 = vpop.f32.mrb[0].mxu0
    %v385 = vadd.f32 %v276, %v384
    %v386 = vpop.f32.mrb[0].mxu0
    %387 = vmatprep.mubr.f32.mxu0 0.0
    %388 = vmatmul.mubr.f32.gmra.mrb[0].mxu0 %v222
    %v389 = vpop.f32.mrb[0].mxu0
    %v390 = vadd.f32 %v276, %v389
    %v391 = vpop.f32.mrb[0].mxu0
    %392 = vmatprep.mubr.f32.mxu0 0.0
    %393 = vmatmul.mubr.f32.gmra.mrb[0].mxu0 %v227
    %v394 = vpop.f32.mrb[0].mxu0
    %v395 = vadd.f32 %v276, %v394
    %v396 = vpop.f32.mrb[0].mxu0
    %397 = vmatprep.mubr.f32.mxu0 0.0
    %398 = vmatmul.mubr.f32.gmra.mrb[0].mxu0 %v232
    %v399 = vpop.f32.mrb[0].mxu0
    %v400 = vadd.f32 %v276, %v399
    %v401 = vpop.f32.mrb[0].mxu0
    %402 = vmatprep.mubr.f32.mxu0 0.0
    %403 = vmatmul.mubr.f32.gmra.mrb[0].mxu0 %v237
    %v404 = vpop.f32.mrb[0].mxu0
    %v405 = vadd.f32 %v276, %v404
    %v406 = vpop.f32.mrb[0].mxu0
    %407 = vmatprep.mubr.f32.mxu0 0.0
    %408 = vmatmul.mubr.f32.gmra.mrb[0].mxu0 %v242
    %v409 = vpop.f32.mrb[0].mxu0
    %v410 = vadd.f32 %v276, %v409
    %v411 = vpop.f32.mrb[0].mxu0
    %412 = vmatprep.mubr.f32.mxu0 0.0
    %413 = vmatmul.mubr.f32.gmra.mrb[0].mxu0 %v247
    %v414 = vpop.f32.mrb[0].mxu0
    %v415 = vadd.f32 %v276, %v414
    %v416 = vpop.f32.mrb[0].mxu0
    %417 = vmatprep.mubr.f32.mxu0 0.0
    %418 = vmatmul.mubr.f32.gmra.mrb[0].mxu0 %v252
    %v419 = vpop.f32.mrb[0].mxu0
    %v420 = vadd.f32 %v276, %v419
    %v421 = vpop.f32.mrb[0].mxu0
    %422 = vdwg.mxu0
    %423 = vadd.xlane.f32.xlu0 %v345
    %v424 = vpop.xlane.xlu0 %423
    %425 = vadd.xlane.f32.xlu0 %v350
    %v426 = vpop.xlane.xlu0 %425
    %427 = vadd.xlane.f32.xlu0 %v355
    %v428 = vpop.xlane.xlu0 %427
    %429 = vadd.xlane.f32.xlu0 %v360
    %v430 = vpop.xlane.xlu0 %429
    %431 = vadd.xlane.f32.xlu0 %v365
    %v432 = vpop.xlane.xlu0 %431
    %433 = vadd.xlane.f32.xlu0 %v370
    %v434 = vpop.xlane.xlu0 %433
    %435 = vadd.xlane.f32.xlu0 %v375
    %v436 = vpop.xlane.xlu0 %435
    %437 = vadd.xlane.f32.xlu0 %v380
    %v438 = vpop.xlane.xlu0 %437
    %439 = vadd.xlane.f32.xlu0 %v385
    %v440 = vpop.xlane.xlu0 %439
    %441 = vadd.xlane.f32.xlu0 %v390
    %v442 = vpop.xlane.xlu0 %441
    %443 = vadd.xlane.f32.xlu0 %v395
    %v444 = vpop.xlane.xlu0 %443
    %445 = vadd.xlane.f32.xlu0 %v400
    %v446 = vpop.xlane.xlu0 %445
    %447 = vadd.xlane.f32.xlu0 %v405
    %v448 = vpop.xlane.xlu0 %447
    %449 = vadd.xlane.f32.xlu0 %v410
    %v450 = vpop.xlane.xlu0 %449
    %451 = vadd.xlane.f32.xlu0 %v415
    %v452 = vpop.xlane.xlu0 %451
    %453 = vadd.xlane.f32.xlu0 %v420
    %v454 = vpop.xlane.xlu0 %453
    %v455 = vmul.f32 %v424, 0.03125
    %v456 = vmul.f32 %v426, 0.03125
    %v457 = vmul.f32 %v428, 0.03125
    %v458 = vmul.f32 %v430, 0.03125
    %v459 = vmul.f32 %v432, 0.03125
    %v460 = vmul.f32 %v434, 0.03125
    %v461 = vmul.f32 %v436, 0.03125
    %v462 = vmul.f32 %v438, 0.03125
    %v463 = vmul.f32 %v440, 0.03125
    %v464 = vmul.f32 %v442, 0.03125
    %v465 = vmul.f32 %v444, 0.03125
    %v466 = vmul.f32 %v446, 0.03125
    %v467 = vmul.f32 %v448, 0.03125
    %v468 = vmul.f32 %v450, 0.03125
    %v469 = vmul.f32 %v452, 0.03125
    %v470 = vmul.f32 %v454, 0.03125
    %v471 = vsub.f32 %v345, %v455
    %v472 = vsub.f32 %v350, %v456
    %v473 = vsub.f32 %v355, %v457
    %v474 = vsub.f32 %v360, %v458
    %v475 = vsub.f32 %v365, %v459
    %v476 = vsub.f32 %v370, %v460
    %v477 = vsub.f32 %v375, %v461
    %v478 = vsub.f32 %v380, %v462
    %v479 = vsub.f32 %v385, %v463
    %v480 = vsub.f32 %v390, %v464
    %v481 = vsub.f32 %v395, %v465
    %v482 = vsub.f32 %v400, %v466
    %v483 = vsub.f32 %v405, %v467
    %v484 = vsub.f32 %v410, %v468
    %v485 = vsub.f32 %v415, %v469
    %v486 = vsub.f32 %v420, %v470
    %v487 = vld [vmem:[%s11] sm:$0x1]
    %v489 = vlaneseq
    %v490 = vshrl.u32 %v489, 7
    %v491 = vsub.s32 0, %v490
    %v492 = vrot.slane %v487, %v491
    %v494 = vmul.f32 %v471, %v492
    %v495 = vmul.f32 %v472, %v492
    %v496 = vmul.f32 %v473, %v492
    %v497 = vmul.f32 %v474, %v492
    %v498 = vmul.f32 %v475, %v492
    %v499 = vmul.f32 %v476, %v492
    %v500 = vmul.f32 %v477, %v492
    %v501 = vmul.f32 %v478, %v492
    %v502 = vmul.f32 %v479, %v492
    %v503 = vmul.f32 %v480, %v492
    %v504 = vmul.f32 %v481, %v492
    %v505 = vmul.f32 %v482, %v492
    %v506 = vmul.f32 %v483, %v492
    %v507 = vmul.f32 %v484, %v492
    %v508 = vmul.f32 %v485, %v492
    %v509 = vmul.f32 %v486, %v492
    %v510 = vmul.f32 %v494, %v494
    %v511 = vmul.f32 %v495, %v495
    %v512 = vmul.f32 %v496, %v496
    %v513 = vmul.f32 %v497, %v497
    %v514 = vmul.f32 %v498, %v498
    %v515 = vmul.f32 %v499, %v499
    %v516 = vmul.f32 %v500, %v500
    %v517 = vmul.f32 %v501, %v501
    %v518 = vmul.f32 %v502, %v502
    %v519 = vmul.f32 %v503, %v503
    %v520 = vmul.f32 %v504, %v504
    %v521 = vmul.f32 %v505, %v505
    %v522 = vmul.f32 %v506, %v506
    %v523 = vmul.f32 %v507, %v507
    %v524 = vmul.f32 %v508, %v508
    %v525 = vmul.f32 %v509, %v509
    %526 = vadd.xlane.f32.xlu0 %v510
    %v527 = vpop.xlane.xlu0 %526
    %528 = vadd.xlane.f32.xlu0 %v511
    %v529 = vpop.xlane.xlu0 %528
    %530 = vadd.xlane.f32.xlu0 %v512
    %v531 = vpop.xlane.xlu0 %530
    %532 = vadd.xlane.f32.xlu0 %v513
    %v533 = vpop.xlane.xlu0 %532
    %534 = vadd.xlane.f32.xlu0 %v514
    %v535 = vpop.xlane.xlu0 %534
    %536 = vadd.xlane.f32.xlu0 %v515
    %v537 = vpop.xlane.xlu0 %536
    %538 = vadd.xlane.f32.xlu0 %v516
    %v539 = vpop.xlane.xlu0 %538
    %540 = vadd.xlane.f32.xlu0 %v517
    %v541 = vpop.xlane.xlu0 %540
    %542 = vadd.xlane.f32.xlu0 %v518
    %v543 = vpop.xlane.xlu0 %542
    %544 = vadd.xlane.f32.xlu0 %v519
    %v545 = vpop.xlane.xlu0 %544
    %546 = vadd.xlane.f32.xlu0 %v520
    %v547 = vpop.xlane.xlu0 %546
    %548 = vadd.xlane.f32.xlu0 %v521
    %v549 = vpop.xlane.xlu0 %548
    %550 = vadd.xlane.f32.xlu0 %v522
    %v551 = vpop.xlane.xlu0 %550
    %552 = vadd.xlane.f32.xlu0 %v523
    %v553 = vpop.xlane.xlu0 %552
    %554 = vadd.xlane.f32.xlu0 %v524
    %v555 = vpop.xlane.xlu0 %554
    %556 = vadd.xlane.f32.xlu0 %v525
    %v557 = vpop.xlane.xlu0 %556
    %v558 = vmul.f32 %v527, 0.03125
    %v559 = vmul.f32 %v529, 0.03125
    %v560 = vmul.f32 %v531, 0.03125
    %v561 = vmul.f32 %v533, 0.03125
    %v562 = vmul.f32 %v535, 0.03125
    %v563 = vmul.f32 %v537, 0.03125
    %v564 = vmul.f32 %v539, 0.03125
    %v565 = vmul.f32 %v541, 0.03125
    %v566 = vmul.f32 %v543, 0.03125
    %v567 = vmul.f32 %v545, 0.03125
    %v568 = vmul.f32 %v547, 0.03125
    %v569 = vmul.f32 %v549, 0.03125
    %v570 = vmul.f32 %v551, 0.03125
    %v571 = vmul.f32 %v553, 0.03125
    %v572 = vmul.f32 %v555, 0.03125
    %v573 = vmul.f32 %v557, 0.03125
    %v574 = vadd.f32 %v558, 1e-05
    %v575 = vadd.f32 %v559, 1e-05
    %v576 = vadd.f32 %v560, 1e-05
    %v577 = vadd.f32 %v561, 1e-05
    %v578 = vadd.f32 %v562, 1e-05
    %v579 = vadd.f32 %v563, 1e-05
    %v580 = vadd.f32 %v564, 1e-05
    %v581 = vadd.f32 %v565, 1e-05
    %v582 = vadd.f32 %v566, 1e-05
    %v583 = vadd.f32 %v567, 1e-05
    %v584 = vadd.f32 %v568, 1e-05
    %v585 = vadd.f32 %v569, 1e-05
    %v586 = vadd.f32 %v570, 1e-05
    %v587 = vadd.f32 %v571, 1e-05
    %v588 = vadd.f32 %v572, 1e-05
    %v589 = vadd.f32 %v573, 1e-05
    %v590 = vrsqrt.pop %v574
    %v591 = vrsqrt.pop %v575
    %v592 = vrsqrt.pop %v576
    %v593 = vrsqrt.pop %v577
    %v594 = vrsqrt.pop %v578
    %v595 = vrsqrt.pop %v579
    %v596 = vrsqrt.pop %v580
    %v597 = vrsqrt.pop %v581
    %v598 = vrsqrt.pop %v582
    %v599 = vrsqrt.pop %v583
    %v600 = vrsqrt.pop %v584
    %v601 = vrsqrt.pop %v585
    %v602 = vrsqrt.pop %v586
    %v603 = vrsqrt.pop %v587
    %v604 = vrsqrt.pop %v588
    %v605 = vrsqrt.pop %v589
    %v606 = vld [vmem:[%s5] sm:$0x1]
    %v608 = vlaneseq
    %v609 = vshrl.u32 %v608, 7
    %v610 = vsub.s32 0, %v609
    %v611 = vrot.slane %v606, %v610
    %v613 = vmul.f32 %v590, %v611
    %v614 = vmul.f32 %v591, %v611
    %v615 = vmul.f32 %v592, %v611
    %v616 = vmul.f32 %v593, %v611
    %v617 = vmul.f32 %v594, %v611
    %v618 = vmul.f32 %v595, %v611
    %v619 = vmul.f32 %v596, %v611
    %v620 = vmul.f32 %v597, %v611
    %v621 = vmul.f32 %v598, %v611
    %v622 = vmul.f32 %v599, %v611
    %v623 = vmul.f32 %v600, %v611
    %v624 = vmul.f32 %v601, %v611
    %v625 = vmul.f32 %v602, %v611
    %v626 = vmul.f32 %v603, %v611
    %v627 = vmul.f32 %v604, %v611
    %v628 = vmul.f32 %v605, %v611
    %v629 = vmul.f32 %v471, %v613
    %v630 = vmul.f32 %v472, %v614
    %v631 = vmul.f32 %v473, %v615
    %v632 = vmul.f32 %v474, %v616
    %v633 = vmul.f32 %v475, %v617
    %v634 = vmul.f32 %v476, %v618
    %v635 = vmul.f32 %v477, %v619
    %v636 = vmul.f32 %v478, %v620
    %v637 = vmul.f32 %v479, %v621
    %v638 = vmul.f32 %v480, %v622
    %v639 = vmul.f32 %v481, %v623
    %v640 = vmul.f32 %v482, %v624
    %v641 = vmul.f32 %v483, %v625
    %v642 = vmul.f32 %v484, %v626
    %v643 = vmul.f32 %v485, %v627
    %v644 = vmul.f32 %v486, %v628
    %v645 = vld [vmem:[%s6] sm:$0x1]
    %v647 = vlaneseq
    %v648 = vshrl.u32 %v647, 7
    %v649 = vsub.s32 0, %v648
    %v650 = vrot.slane %v645, %v649
    %v652 = vadd.f32 %v629, %v650
    %v653 = vadd.f32 %v630, %v650
    %v654 = vadd.f32 %v631, %v650
    %v655 = vadd.f32 %v632, %v650
    %v656 = vadd.f32 %v633, %v650
    %v657 = vadd.f32 %v634, %v650
    %v658 = vadd.f32 %v635, %v650
    %v659 = vadd.f32 %v636, %v650
    %v660 = vadd.f32 %v637, %v650
    %v661 = vadd.f32 %v638, %v650
    %v662 = vadd.f32 %v639, %v650
    %v663 = vadd.f32 %v640, %v650
    %v664 = vadd.f32 %v641, %v650
    %v665 = vadd.f32 %v642, %v650
    %v666 = vadd.f32 %v643, %v650
    %v667 = vadd.f32 %v644, %v650
    %s668 = sld [smem:[#allocation5]]
    %vm669 = vcmp.ge.f32.partialorder %v652, 0.0
    %vm670 = vcmp.ge.f32.partialorder %v653, 0.0
    %vm671 = vcmp.ge.f32.partialorder %v654, 0.0
    %vm672 = vcmp.ge.f32.partialorder %v655, 0.0
    %vm673 = vcmp.ge.f32.partialorder %v656, 0.0
    %vm674 = vcmp.ge.f32.partialorder %v657, 0.0
    %vm675 = vcmp.ge.f32.partialorder %v658, 0.0
    %vm676 = vcmp.ge.f32.partialorder %v659, 0.0
    %vm677 = vcmp.ge.f32.partialorder %v660, 0.0
    %vm678 = vcmp.ge.f32.partialorder %v661, 0.0
    %vm679 = vcmp.ge.f32.partialorder %v662, 0.0
    %vm680 = vcmp.ge.f32.partialorder %v663, 0.0
    %vm681 = vcmp.ge.f32.partialorder %v664, 0.0
    %vm682 = vcmp.ge.f32.partialorder %v665, 0.0
    %vm683 = vcmp.ge.f32.partialorder %v666, 0.0
    %vm684 = vcmp.ge.f32.partialorder %v667, 0.0
    %v685 = vstv %s668
    %v686 = vmul.f32 %v685, %v652
    %v687 = vmul.f32 %v685, %v653
    %v688 = vmul.f32 %v685, %v654
    %v689 = vmul.f32 %v685, %v655
    %v690 = vmul.f32 %v685, %v656
    %v691 = vmul.f32 %v685, %v657
    %v692 = vmul.f32 %v685, %v658
    %v693 = vmul.f32 %v685, %v659
    %v694 = vmul.f32 %v685, %v660
    %v695 = vmul.f32 %v685, %v661
    %v696 = vmul.f32 %v685, %v662
    %v697 = vmul.f32 %v685, %v663
    %v698 = vmul.f32 %v685, %v664
    %v699 = vmul.f32 %v685, %v665
    %v700 = vmul.f32 %v685, %v666
    %v701 = vmul.f32 %v685, %v667
    %v702 = vsel %vm669, %v652, %v686
    %v703 = vsel %vm670, %v653, %v687
    %v704 = vsel %vm671, %v654, %v688
    %v705 = vsel %vm672, %v655, %v689
    %v706 = vsel %vm673, %v656, %v690
    %v707 = vsel %vm674, %v657, %v691
    %v708 = vsel %vm675, %v658, %v692
    %v709 = vsel %vm676, %v659, %v693
    %v710 = vsel %vm677, %v660, %v694
    %v711 = vsel %vm678, %v661, %v695
    %v712 = vsel %vm679, %v662, %v696
    %v713 = vsel %vm680, %v663, %v697
    %v714 = vsel %vm681, %v664, %v698
    %v715 = vsel %vm682, %v665, %v699
    %v716 = vsel %vm683, %v666, %v700
    %v717 = vsel %vm684, %v667, %v701
    %v718 = vld [vmem:[%s7] sm:$0xff]
    %v719 = vld [vmem:[%s7 + $0x8] sm:$0xff]
    %v720 = vld [vmem:[%s7 + $0x10] sm:$0xff]
    %v721 = vld [vmem:[%s7 + $0x18] sm:$0xff]
    %v722 = vld [vmem:[%s7 + $0x20] sm:$0xff]
    %v723 = vld [vmem:[%s7 + $0x28] sm:$0xff]
    %v724 = vld [vmem:[%s7 + $0x30] sm:$0xff]
    %v725 = vld [vmem:[%s7 + $0x38] sm:$0xff]
    %v726 = vld [vmem:[%s7 + $0x40] sm:$0xff]
    %v727 = vld [vmem:[%s7 + $0x48] sm:$0xff]
    %v728 = vld [vmem:[%s7 + $0x50] sm:$0xff]
    %v729 = vld [vmem:[%s7 + $0x58] sm:$0xff]
    %v730 = vld [vmem:[%s7 + $0x60] sm:$0xff]
    %v731 = vld [vmem:[%s7 + $0x68] sm:$0xff]
    %v732 = vld [vmem:[%s7 + $0x70] sm:$0xff]
    %v733 = vld [vmem:[%s7 + $0x78] sm:$0xff]
    %v734 = vld [vmem:[%s8] sm:$0x1]
    %v736 = vlaneseq
    %v737 = vshrl.u32 %v736, 7
    %v738 = vsub.s32 0, %v737
    %v739 = vrot.slane %v734, %v738
    %741 = vmatprep.subr.mxu0 0.0
    %742 = vmatpush1.msra.mxu0 %v718
    %743 = vmatprep.subr.mxu0 0.0
    %744 = vmatpush1.msra.mxu0 %v719
    %745 = vmatprep.subr.mxu0 0.0
    %746 = vmatpush1.msra.mxu0 %v720
    %747 = vmatprep.subr.mxu0 0.0
    %748 = vmatpush1.msra.mxu0 %v721
    %749 = vmatprep.subr.mxu0 0.0
    %750 = vmatpush1.msra.mxu0 %v722
    %751 = vmatprep.subr.mxu0 0.0
    %752 = vmatpush1.msra.mxu0 %v723
    %753 = vmatprep.subr.mxu0 0.0
    %754 = vmatpush1.msra.mxu0 %v724
    %755 = vmatprep.subr.mxu0 0.0
    %756 = vmatpush1.msra.mxu0 %v725
    %757 = vmatprep.subr.mxu0 0.0
    %758 = vmatpush1.msra.mxu0 %v726
    %759 = vmatprep.subr.mxu0 0.0
    %760 = vmatpush1.msra.mxu0 %v727
    %761 = vmatprep.subr.mxu0 0.0
    %762 = vmatpush1.msra.mxu0 %v728
    %763 = vmatprep.subr.mxu0 0.0
    %764 = vmatpush1.msra.mxu0 %v729
    %765 = vmatprep.subr.mxu0 0.0
    %766 = vmatpush1.msra.mxu0 %v730
    %767 = vmatprep.subr.mxu0 0.0
    %768 = vmatpush1.msra.mxu0 %v731
    %769 = vmatprep.subr.mxu0 0.0
    %770 = vmatpush1.msra.mxu0 %v732
    %771 = vmatprep.subr.mxu0 0.0
    %772 = vmatpush1.msra.mxu0 %v733
    %773 = vmatprep.subr.mxu0 0.0
    %774 = vmatpush1.msra.mxu0 0.0
    %775 = vmatprep.subr.mxu0 0.0
    %776 = vmatpush1.msra.mxu0 0.0
    %777 = vmatprep.subr.mxu0 0.0
    %778 = vmatpush1.msra.mxu0 0.0
    %779 = vmatprep.subr.mxu0 0.0
    %780 = vmatpush1.msra.mxu0 0.0
    %781 = vmatprep.subr.mxu0 0.0
    %782 = vmatpush1.msra.mxu0 0.0
    %783 = vmatprep.subr.mxu0 0.0
    %784 = vmatpush1.msra.mxu0 0.0
    %785 = vmatprep.subr.mxu0 0.0
    %786 = vmatpush1.msra.mxu0 0.0
    %787 = vmatprep.subr.mxu0 0.0
    %788 = vmatpush1.msra.mxu0 0.0
    %789 = vmatprep.subr.mxu0 0.0
    %790 = vmatpush1.msra.mxu0 0.0
    %791 = vmatprep.subr.mxu0 0.0
    %792 = vmatpush1.msra.mxu0 0.0
    %793 = vmatprep.subr.mxu0 0.0
    %794 = vmatpush1.msra.mxu0 0.0
    %795 = vmatprep.subr.mxu0 0.0
    %796 = vmatpush1.msra.mxu0 0.0
    %797 = vmatprep.subr.mxu0 0.0
    %798 = vmatpush1.msra.mxu0 0.0
    %799 = vmatprep.subr.mxu0 0.0
    %800 = vmatpush1.msra.mxu0 0.0
    %801 = vmatprep.subr.mxu0 0.0
    %802 = vmatpush1.msra.mxu0 0.0
    %803 = vmatprep.subr.mxu0 0.0
    %804 = vmatpush1.msra.mxu0 0.0
    %805 = vmatprep.mubr.f32.mxu0 0.0
    %806 = vmatmul.mubr.f32.gmra.mrb[0].mxu0 %v702
    %v807 = vpop.f32.mrb[0].mxu0
    %v808 = vadd.f32 %v739, %v807
    %v809 = vpop.f32.mrb[0].mxu0
    %810 = vmatprep.mubr.f32.mxu0 0.0
    %811 = vmatmul.mubr.f32.gmra.mrb[0].mxu0 %v703
    %v812 = vpop.f32.mrb[0].mxu0
    %v813 = vadd.f32 %v739, %v812
    %v814 = vpop.f32.mrb[0].mxu0
    %815 = vmatprep.mubr.f32.mxu0 0.0
    %816 = vmatmul.mubr.f32.gmra.mrb[0].mxu0 %v704
    %v817 = vpop.f32.mrb[0].mxu0
    %v818 = vadd.f32 %v739, %v817
    %v819 = vpop.f32.mrb[0].mxu0
    %820 = vmatprep.mubr.f32.mxu0 0.0
    %821 = vmatmul.mubr.f32.gmra.mrb[0].mxu0 %v705
    %v822 = vpop.f32.mrb[0].mxu0
    %v823 = vadd.f32 %v739, %v822
    %v824 = vpop.f32.mrb[0].mxu0
    %825 = vmatprep.mubr.f32.mxu0 0.0
    %826 = vmatmul.mubr.f32.gmra.mrb[0].mxu0 %v706
    %v827 = vpop.f32.mrb[0].mxu0
    %v828 = vadd.f32 %v739, %v827
    %v829 = vpop.f32.mrb[0].mxu0
    %830 = vmatprep.mubr.f32.mxu0 0.0
    %831 = vmatmul.mubr.f32.gmra.mrb[0].mxu0 %v707
    %v832 = vpop.f32.mrb[0].mxu0
    %v833 = vadd.f32 %v739, %v832
    %v834 = vpop.f32.mrb[0].mxu0
    %835 = vmatprep.mubr.f32.mxu0 0.0
    %836 = vmatmul.mubr.f32.gmra.mrb[0].mxu0 %v708
    %v837 = vpop.f32.mrb[0].mxu0
    %v838 = vadd.f32 %v739, %v837
    %v839 = vpop.f32.mrb[0].mxu0
    %840 = vmatprep.mubr.f32.mxu0 0.0
    %841 = vmatmul.mubr.f32.gmra.mrb[0].mxu0 %v709
    %v842 = vpop.f32.mrb[0].mxu0
    %v843 = vadd.f32 %v739, %v842
    %v844 = vpop.f32.mrb[0].mxu0
    %845 = vmatprep.mubr.f32.mxu0 0.0
    %846 = vmatmul.mubr.f32.gmra.mrb[0].mxu0 %v710
    %v847 = vpop.f32.mrb[0].mxu0
    %v848 = vadd.f32 %v739, %v847
    %v849 = vpop.f32.mrb[0].mxu0
    %850 = vmatprep.mubr.f32.mxu0 0.0
    %851 = vmatmul.mubr.f32.gmra.mrb[0].mxu0 %v711
    %v852 = vpop.f32.mrb[0].mxu0
    %v853 = vadd.f32 %v739, %v852
    %v854 = vpop.f32.mrb[0].mxu0
    %855 = vmatprep.mubr.f32.mxu0 0.0
    %856 = vmatmul.mubr.f32.gmra.mrb[0].mxu0 %v712
    %v857 = vpop.f32.mrb[0].mxu0
    %v858 = vadd.f32 %v739, %v857
    %v859 = vpop.f32.mrb[0].mxu0
    %860 = vmatprep.mubr.f32.mxu0 0.0
    %861 = vmatmul.mubr.f32.gmra.mrb[0].mxu0 %v713
    %v862 = vpop.f32.mrb[0].mxu0
    %v863 = vadd.f32 %v739, %v862
    %v864 = vpop.f32.mrb[0].mxu0
    %865 = vmatprep.mubr.f32.mxu0 0.0
    %866 = vmatmul.mubr.f32.gmra.mrb[0].mxu0 %v714
    %v867 = vpop.f32.mrb[0].mxu0
    %v868 = vadd.f32 %v739, %v867
    %v869 = vpop.f32.mrb[0].mxu0
    %870 = vmatprep.mubr.f32.mxu0 0.0
    %871 = vmatmul.mubr.f32.gmra.mrb[0].mxu0 %v715
    %v872 = vpop.f32.mrb[0].mxu0
    %v873 = vadd.f32 %v739, %v872
    %v874 = vpop.f32.mrb[0].mxu0
    %875 = vmatprep.mubr.f32.mxu0 0.0
    %876 = vmatmul.mubr.f32.gmra.mrb[0].mxu0 %v716
    %v877 = vpop.f32.mrb[0].mxu0
    %v878 = vadd.f32 %v739, %v877
    %v879 = vpop.f32.mrb[0].mxu0
    %880 = vmatprep.mubr.f32.mxu0 0.0
    %881 = vmatmul.mubr.f32.gmra.mrb[0].mxu0 %v717
    %v882 = vpop.f32.mrb[0].mxu0
    %v883 = vadd.f32 %v739, %v882
    %v884 = vpop.f32.mrb[0].mxu0
    %885 = vdwg.mxu0
    %v886 = vadd.f32 %v808, %v177
    %v887 = vadd.f32 %v813, %v182
    %v888 = vadd.f32 %v818, %v187
    %v889 = vadd.f32 %v823, %v192
    %v890 = vadd.f32 %v828, %v197
    %v891 = vadd.f32 %v833, %v202
    %v892 = vadd.f32 %v838, %v207
    %v893 = vadd.f32 %v843, %v212
    %v894 = vadd.f32 %v848, %v217
    %v895 = vadd.f32 %v853, %v222
    %v896 = vadd.f32 %v858, %v227
    %v897 = vadd.f32 %v863, %v232
    %v898 = vadd.f32 %v868, %v237
    %v899 = vadd.f32 %v873, %v242
    %v900 = vadd.f32 %v878, %v247
    %v901 = vadd.f32 %v883, %v252
    %v902 = vld [vmem:[#allocation2] sm:$0xff]
    %v903 = vld [vmem:[#allocation2 + $0x8] sm:$0xff]
    %v904 = vld [vmem:[#allocation2 + $0x10] sm:$0xff]
    %v905 = vld [vmem:[#allocation2 + $0x18] sm:$0xff]
    %v906 = vld [vmem:[#allocation2 + $0x20] sm:$0xff]
    %v907 = vld [vmem:[#allocation2 + $0x28] sm:$0xff]
    %v908 = vld [vmem:[#allocation2 + $0x30] sm:$0xff]
    %v909 = vld [vmem:[#allocation2 + $0x38] sm:$0xff]
    %v910 = vld [vmem:[#allocation2 + $0x40] sm:$0xff]
    %v911 = vld [vmem:[#allocation2 + $0x48] sm:$0xff]
    %v912 = vld [vmem:[#allocation2 + $0x50] sm:$0xff]
    %v913 = vld [vmem:[#allocation2 + $0x58] sm:$0xff]
    %v914 = vld [vmem:[#allocation2 + $0x60] sm:$0xff]
    %v915 = vld [vmem:[#allocation2 + $0x68] sm:$0xff]
    %v916 = vld [vmem:[#allocation2 + $0x70] sm:$0xff]
    %v917 = vld [vmem:[#allocation2 + $0x78] sm:$0xff]
    %v918 = vld [vmem:[%s10] sm:$0x1]
    %v920 = vlaneseq
    %v921 = vshrl.u32 %v920, 7
    %v922 = vsub.s32 0, %v921
    %v923 = vrot.slane %v918, %v922
    %925 = vmatprep.subr.mxu0 0.0
    %926 = vmatpush1.msra.mxu0 %v902
    %927 = vmatprep.subr.mxu0 0.0
    %928 = vmatpush1.msra.mxu0 %v903
    %929 = vmatprep.subr.mxu0 0.0
    %930 = vmatpush1.msra.mxu0 %v904
    %931 = vmatprep.subr.mxu0 0.0
    %932 = vmatpush1.msra.mxu0 %v905
    %933 = vmatprep.subr.mxu0 0.0
    %934 = vmatpush1.msra.mxu0 %v906
    %935 = vmatprep.subr.mxu0 0.0
    %936 = vmatpush1.msra.mxu0 %v907
    %937 = vmatprep.subr.mxu0 0.0
    %938 = vmatpush1.msra.mxu0 %v908
    %939 = vmatprep.subr.mxu0 0.0
    %940 = vmatpush1.msra.mxu0 %v909
    %941 = vmatprep.subr.mxu0 0.0
    %942 = vmatpush1.msra.mxu0 %v910
    %943 = vmatprep.subr.mxu0 0.0
    %944 = vmatpush1.msra.mxu0 %v911
    %945 = vmatprep.subr.mxu0 0.0
    %946 = vmatpush1.msra.mxu0 %v912
    %947 = vmatprep.subr.mxu0 0.0
    %948 = vmatpush1.msra.mxu0 %v913
    %949 = vmatprep.subr.mxu0 0.0
    %950 = vmatpush1.msra.mxu0 %v914
    %951 = vmatprep.subr.mxu0 0.0
    %952 = vmatpush1.msra.mxu0 %v915
    %953 = vmatprep.subr.mxu0 0.0
    %954 = vmatpush1.msra.mxu0 %v916
    %955 = vmatprep.subr.mxu0 0.0
    %956 = vmatpush1.msra.mxu0 %v917
    %957 = vmatprep.subr.mxu0 0.0
    %958 = vmatpush1.msra.mxu0 0.0
    %959 = vmatprep.subr.mxu0 0.0
    %960 = vmatpush1.msra.mxu0 0.0
    %961 = vmatprep.subr.mxu0 0.0
    %962 = vmatpush1.msra.mxu0 0.0
    %963 = vmatprep.subr.mxu0 0.0
    %964 = vmatpush1.msra.mxu0 0.0
    %965 = vmatprep.subr.mxu0 0.0
    %966 = vmatpush1.msra.mxu0 0.0
    %967 = vmatprep.subr.mxu0 0.0
    %968 = vmatpush1.msra.mxu0 0.0
    %969 = vmatprep.subr.mxu0 0.0
    %970 = vmatpush1.msra.mxu0 0.0
    %971 = vmatprep.subr.mxu0 0.0
    %972 = vmatpush1.msra.mxu0 0.0
    %973 = vmatprep.subr.mxu0 0.0
    %974 = vmatpush1.msra.mxu0 0.0
    %975 = vmatprep.subr.mxu0 0.0
    %976 = vmatpush1.msra.mxu0 0.0
    %977 = vmatprep.subr.mxu0 0.0
    %978 = vmatpush1.msra.mxu0 0.0
    %979 = vmatprep.subr.mxu0 0.0
    %980 = vmatpush1.msra.mxu0 0.0
    %981 = vmatprep.subr.mxu0 0.0
    %982 = vmatpush1.msra.mxu0 0.0
    %983 = vmatprep.subr.mxu0 0.0
    %984 = vmatpush1.msra.mxu0 0.0
    %985 = vmatprep.subr.mxu0 0.0
    %986 = vmatpush1.msra.mxu0 0.0
    %987 = vmatprep.subr.mxu0 0.0
    %988 = vmatpush1.msra.mxu0 0.0
    %989 = vmatprep.mubr.f32.mxu0 0.0
    %990 = vmatmul.mubr.f32.gmra.mrb[0].mxu0 %v886
    %v991 = vpop.f32.mrb[0].mxu0
    %v992 = vadd.f32 %v923, %v991
    %v993 = vpop.f32.mrb[0].mxu0
    %994 = vmatprep.mubr.f32.mxu0 0.0
    %995 = vmatmul.mubr.f32.gmra.mrb[0].mxu0 %v887
    %v996 = vpop.f32.mrb[0].mxu0
    %v997 = vadd.f32 %v923, %v996
    %v998 = vpop.f32.mrb[0].mxu0
    %999 = vmatprep.mubr.f32.mxu0 0.0
    %1000 = vmatmul.mubr.f32.gmra.mrb[0].mxu0 %v888
    %v1001 = vpop.f32.mrb[0].mxu0
    %v1002 = vadd.f32 %v923, %v1001
    %v1003 = vpop.f32.mrb[0].mxu0
    %1004 = vmatprep.mubr.f32.mxu0 0.0
    %1005 = vmatmul.mubr.f32.gmra.mrb[0].mxu0 %v889
    %v1006 = vpop.f32.mrb[0].mxu0
    %v1007 = vadd.f32 %v923, %v1006
    %v1008 = vpop.f32.mrb[0].mxu0
    %1009 = vmatprep.mubr.f32.mxu0 0.0
    %1010 = vmatmul.mubr.f32.gmra.mrb[0].mxu0 %v890
    %v1011 = vpop.f32.mrb[0].mxu0
    %v1012 = vadd.f32 %v923, %v1011
    %v1013 = vpop.f32.mrb[0].mxu0
    %1014 = vmatprep.mubr.f32.mxu0 0.0
    %1015 = vmatmul.mubr.f32.gmra.mrb[0].mxu0 %v891
    %v1016 = vpop.f32.mrb[0].mxu0
    %v1017 = vadd.f32 %v923, %v1016
    %v1018 = vpop.f32.mrb[0].mxu0
    %1019 = vmatprep.mubr.f32.mxu0 0.0
    %1020 = vmatmul.mubr.f32.gmra.mrb[0].mxu0 %v892
    %v1021 = vpop.f32.mrb[0].mxu0
    %v1022 = vadd.f32 %v923, %v1021
    %v1023 = vpop.f32.mrb[0].mxu0
    %1024 = vmatprep.mubr.f32.mxu0 0.0
    %1025 = vmatmul.mubr.f32.gmra.mrb[0].mxu0 %v893
    %v1026 = vpop.f32.mrb[0].mxu0
    %v1027 = vadd.f32 %v923, %v1026
    %v1028 = vpop.f32.mrb[0].mxu0
    %1029 = vmatprep.mubr.f32.mxu0 0.0
    %1030 = vmatmul.mubr.f32.gmra.mrb[0].mxu0 %v894
    %v1031 = vpop.f32.mrb[0].mxu0
    %v1032 = vadd.f32 %v923, %v1031
    %v1033 = vpop.f32.mrb[0].mxu0
    %1034 = vmatprep.mubr.f32.mxu0 0.0
    %1035 = vmatmul.mubr.f32.gmra.mrb[0].mxu0 %v895
    %v1036 = vpop.f32.mrb[0].mxu0
    %v1037 = vadd.f32 %v923, %v1036
    %v1038 = vpop.f32.mrb[0].mxu0
    %1039 = vmatprep.mubr.f32.mxu0 0.0
    %1040 = vmatmul.mubr.f32.gmra.mrb[0].mxu0 %v896
    %v1041 = vpop.f32.mrb[0].mxu0
    %v1042 = vadd.f32 %v923, %v1041
    %v1043 = vpop.f32.mrb[0].mxu0
    %1044 = vmatprep.mubr.f32.mxu0 0.0
    %1045 = vmatmul.mubr.f32.gmra.mrb[0].mxu0 %v897
    %v1046 = vpop.f32.mrb[0].mxu0
    %v1047 = vadd.f32 %v923, %v1046
    %v1048 = vpop.f32.mrb[0].mxu0
    %1049 = vmatprep.mubr.f32.mxu0 0.0
    %1050 = vmatmul.mubr.f32.gmra.mrb[0].mxu0 %v898
    %v1051 = vpop.f32.mrb[0].mxu0
    %v1052 = vadd.f32 %v923, %v1051
    %v1053 = vpop.f32.mrb[0].mxu0
    %1054 = vmatprep.mubr.f32.mxu0 0.0
    %1055 = vmatmul.mubr.f32.gmra.mrb[0].mxu0 %v899
    %v1056 = vpop.f32.mrb[0].mxu0
    %v1057 = vadd.f32 %v923, %v1056
    %v1058 = vpop.f32.mrb[0].mxu0
    %1059 = vmatprep.mubr.f32.mxu0 0.0
    %1060 = vmatmul.mubr.f32.gmra.mrb[0].mxu0 %v900
    %v1061 = vpop.f32.mrb[0].mxu0
    %v1062 = vadd.f32 %v923, %v1061
    %v1063 = vpop.f32.mrb[0].mxu0
    %1064 = vmatprep.mubr.f32.mxu0 0.0
    %1065 = vmatmul.mubr.f32.gmra.mrb[0].mxu0 %v901
    %v1066 = vpop.f32.mrb[0].mxu0
    %v1067 = vadd.f32 %v923, %v1066
    %v1068 = vpop.f32.mrb[0].mxu0
    %1069 = vdwg.mxu0
    %s1070 = sld [smem:[#allocation5 + $0x1]]
    %vm1071 = vcmp.ge.f32.partialorder %v992, 0.0
    %vm1072 = vcmp.ge.f32.partialorder %v997, 0.0
    %vm1073 = vcmp.ge.f32.partialorder %v1002, 0.0
    %vm1074 = vcmp.ge.f32.partialorder %v1007, 0.0
    %vm1075 = vcmp.ge.f32.partialorder %v1012, 0.0
    %vm1076 = vcmp.ge.f32.partialorder %v1017, 0.0
    %vm1077 = vcmp.ge.f32.partialorder %v1022, 0.0
    %vm1078 = vcmp.ge.f32.partialorder %v1027, 0.0
    %vm1079 = vcmp.ge.f32.partialorder %v1032, 0.0
    %vm1080 = vcmp.ge.f32.partialorder %v1037, 0.0
    %vm1081 = vcmp.ge.f32.partialorder %v1042, 0.0
    %vm1082 = vcmp.ge.f32.partialorder %v1047, 0.0
    %vm1083 = vcmp.ge.f32.partialorder %v1052, 0.0
    %vm1084 = vcmp.ge.f32.partialorder %v1057, 0.0
    %vm1085 = vcmp.ge.f32.partialorder %v1062, 0.0
    %vm1086 = vcmp.ge.f32.partialorder %v1067, 0.0
    %v1087 = vstv %s1070
    %v1088 = vmul.f32 %v1087, %v992
    %v1089 = vmul.f32 %v1087, %v997
    %v1090 = vmul.f32 %v1087, %v1002
    %v1091 = vmul.f32 %v1087, %v1007
    %v1092 = vmul.f32 %v1087, %v1012
    %v1093 = vmul.f32 %v1087, %v1017
    %v1094 = vmul.f32 %v1087, %v1022
    %v1095 = vmul.f32 %v1087, %v1027
    %v1096 = vmul.f32 %v1087, %v1032
    %v1097 = vmul.f32 %v1087, %v1037
    %v1098 = vmul.f32 %v1087, %v1042
    %v1099 = vmul.f32 %v1087, %v1047
    %v1100 = vmul.f32 %v1087, %v1052
    %v1101 = vmul.f32 %v1087, %v1057
    %v1102 = vmul.f32 %v1087, %v1062
    %v1103 = vmul.f32 %v1087, %v1067
    %v1104 = vsel %vm1071, %v992, %v1088
    %v1105 = vsel %vm1072, %v997, %v1089
    %v1106 = vsel %vm1073, %v1002, %v1090
    %v1107 = vsel %vm1074, %v1007, %v1091
    %v1108 = vsel %vm1075, %v1012, %v1092
    %v1109 = vsel %vm1076, %v1017, %v1093
    %v1110 = vsel %vm1077, %v1022, %v1094
    %v1111 = vsel %vm1078, %v1027, %v1095
    %v1112 = vsel %vm1079, %v1032, %v1096
    %v1113 = vsel %vm1080, %v1037, %v1097
    %v1114 = vsel %vm1081, %v1042, %v1098
    %v1115 = vsel %vm1082, %v1047, %v1099
    %v1116 = vsel %vm1083, %v1052, %v1100
    %v1117 = vsel %vm1084, %v1057, %v1101
    %v1118 = vsel %vm1085, %v1062, %v1102
    %v1119 = vsel %vm1086, %v1067, %v1103
    %1120 = vst [vmem:[%s13] sm:$0xff] %v1104
    %1121 = vst [vmem:[%s13 + $0x8] sm:$0xff] %v1105
    %1122 = vst [vmem:[%s13 + $0x10] sm:$0xff] %v1106
    %1123 = vst [vmem:[%s13 + $0x18] sm:$0xff] %v1107
    %1124 = vst [vmem:[%s13 + $0x20] sm:$0xff] %v1108
    %1125 = vst [vmem:[%s13 + $0x28] sm:$0xff] %v1109
    %1126 = vst [vmem:[%s13 + $0x30] sm:$0xff] %v1110
    %1127 = vst [vmem:[%s13 + $0x38] sm:$0xff] %v1111
    %1128 = vst [vmem:[%s13 + $0x40] sm:$0xff] %v1112
    %1129 = vst [vmem:[%s13 + $0x48] sm:$0xff] %v1113
    %1130 = vst [vmem:[%s13 + $0x50] sm:$0xff] %v1114
    %1131 = vst [vmem:[%s13 + $0x58] sm:$0xff] %v1115
    %1132 = vst [vmem:[%s13 + $0x60] sm:$0xff] %v1116
    %1133 = vst [vmem:[%s13 + $0x68] sm:$0xff] %v1117
    %1134 = vst [vmem:[%s13 + $0x70] sm:$0xff] %v1118
    %1135 = vst [vmem:[%s13 + $0x78] sm:$0xff] %v1119
    // Predicated region
    $region62: #{_mlp_block_padded.1} parent=1 // pred_check
      _
    $region63: #{_mlp_block_padded.1} parent=1 // pred_check_branch
      %1137 = sbr.rel (0) target = $region65
    $region64: #{_mlp_block_padded.1} parent=1 // pred_region
      _
    $region65: #{_mlp_block_padded.1} parent=1 // pred_fallthru
      _
    // Predicated region
    $region66: #{_mlp_block_padded.1} parent=1 // pred_check
      _
    $region67: #{_mlp_block_padded.1} parent=1 // pred_check_branch
      %1139 = sbr.rel (0) target = $region69
    $region68: #{_mlp_block_padded.1} parent=1 // pred_region
      _
    $region69: #{_mlp_block_padded.1} parent=1 // pred_fallthru
      _
    %1140 = vsyncpa [#allocation3], 1
    %1141 = vsyncpa [#allocation4], 1

// kernel: _mlp_block_padded.1
$region0: #{_mlp_block_padded.1}
  #allocation0 [shape = 'u32[]', space=smem, size = 0x4, offset = 0x4, fixed_abs, tag = 'smem constant byte address 0x4 - core index']
  #allocation1 [shape = 'u32[144,128]{1,0:T(1,128)}', space=vmem, size = 0x12000, scoped, tag = 'internal scratch']
  %s0 = inlined_call_operand.vmem [shape: f32[128,128], index: 0, kind: input, shape index: {}]
  %s1 = inlined_call_operand.vmem [shape: f32[128,128], index: 1, kind: input, shape index: {}]
  %s2 = inlined_call_operand.vmem [shape: f32[1,128], index: 2, kind: input, shape index: {}]
  %s3 = inlined_call_operand.vmem [shape: f32[128,128], index: 3, kind: input, shape index: {}]
  %s4 = inlined_call_operand.vmem [shape: f32[1,128], index: 4, kind: input, shape index: {}]
  %s5 = inlined_call_operand.vmem [shape: f32[1,128], index: 5, kind: input, shape index: {}]
  %s6 = inlined_call_operand.vmem [shape: f32[1,128], index: 6, kind: input, shape index: {}]
  %s7 = inlined_call_operand.vmem [shape: f32[128,128], index: 7, kind: input, shape index: {}]
  %s8 = inlined_call_operand.vmem [shape: f32[1,128], index: 8, kind: input, shape index: {}]
  %s9 = inlined_call_operand.hbm [shape: f32[128,128], index: 9, kind: input, shape index: {}]
  %s10 = inlined_call_operand.vmem [shape: f32[1,128], index: 10, kind: input, shape index: {}]
  %s11 = inlined_call_operand.vmem [shape: f32[1,128], index: 11, kind: input, shape index: {}]
  %s12 = inlined_call_operand.vmem [shape: f32[2], index: 12, kind: input, shape index: {}]
  %s13 = inlined_call_operand.vmem [shape: f32[128,128], index: 13, kind: output, shape index: {}]
  %s14 = sld [smem:[#allocation0]]
  $region70: #{_mlp_block_padded.1} parent=0
    _
  %s16 = ssub.s32 1, %s14
  %s17 = scalar_select 0, %s16, %s14
  $region1: #{_mlp_block_padded.1} parent=0
    #allocation2 [shape = 'u8[65536]{0}', space=vmem, size = 0x10000, scoped, tag = 'input window, operand 9, single buffered']
    #allocation3 [shape = 's32[1]{0}', space=sflag, size = 0x4, scoped, tag = 'scoped memory for _mlp_block_padded.1']
    #allocation4 [shape = 's32[1]{0}', space=sflag, size = 0x4, scoped, tag = 'scoped memory for _mlp_block_padded.1']
    #allocation5 [shape = 'u8[512]{0}', space=smem, size = 0x200, scoped, tag = 'input window, operand 12, single buffered']
    %18 = vsyncpa [#allocation3], 0
    %19 = vsyncpa [#allocation4], 0
    // Predicated region
    $region2: #{_mlp_block_padded.1} parent=1 // pred_check
      _
    $region3: #{_mlp_block_padded.1} parent=1 // pred_check_branch
      %21 = sbr.rel (0) target = $region5
    $region4: #{_mlp_block_padded.1} parent=1 // pred_region
      _
    $region5: #{_mlp_block_padded.1} parent=1 // pred_fallthru
      _
    // Predicated region
    $region6: #{_mlp_block_padded.1} parent=1 // pred_check
      _
    $region7: #{_mlp_block_padded.1} parent=1 // pred_check_branch
      %23 = sbr.rel (0) target = $region9
    $region8: #{_mlp_block_padded.1} parent=1 // pred_region
      _
    $region9: #{_mlp_block_padded.1} parent=1 // pred_fallthru
      _
    // Predicated region
    $region10: #{_mlp_block_padded.1} parent=1 // pred_check
      _
    $region11: #{_mlp_block_padded.1} parent=1 // pred_check_branch
      %25 = sbr.rel (0) target = $region13
    $region12: #{_mlp_block_padded.1} parent=1 // pred_region
      _
    $region13: #{_mlp_block_padded.1} parent=1 // pred_fallthru
      _
    // Predicated region
    $region14: #{_mlp_block_padded.1} parent=1 // pred_check
      _
    $region15: #{_mlp_block_padded.1} parent=1 // pred_check_branch
      %27 = sbr.rel (0) target = $region17
    $region16: #{_mlp_block_padded.1} parent=1 // pred_region
      _
    $region17: #{_mlp_block_padded.1} parent=1 // pred_fallthru
      _
    // Predicated region
    $region18: #{_mlp_block_padded.1} parent=1 // pred_check
      _
    $region19: #{_mlp_block_padded.1} parent=1 // pred_check_branch
      %29 = sbr.rel (0) target = $region21
    $region20: #{_mlp_block_padded.1} parent=1 // pred_region
      _
    $region21: #{_mlp_block_padded.1} parent=1 // pred_fallthru
      _
    // Predicated region
    $region22: #{_mlp_block_padded.1} parent=1 // pred_check
      _
    $region23: #{_mlp_block_padded.1} parent=1 // pred_check_branch
      %31 = sbr.rel (0) target = $region25
    $region24: #{_mlp_block_padded.1} parent=1 // pred_region
      _
    $region25: #{_mlp_block_padded.1} parent=1 // pred_fallthru
      _
    // Predicated region
    $region26: #{_mlp_block_padded.1} parent=1 // pred_check
      _
    $region27: #{_mlp_block_padded.1} parent=1 // pred_check_branch
      %33 = sbr.rel (0) target = $region29
    $region28: #{_mlp_block_padded.1} parent=1 // pred_region
      _
    $region29: #{_mlp_block_padded.1} parent=1 // pred_fallthru
      _
    // Predicated region
    $region30: #{_mlp_block_padded.1} parent=1 // pred_check
      _
    $region31: #{_mlp_block_padded.1} parent=1 // pred_check_branch
      %35 = sbr.rel (0) target = $region33
    $region32: #{_mlp_block_padded.1} parent=1 // pred_region
      _
    $region33: #{_mlp_block_padded.1} parent=1 // pred_fallthru
      _
    // Predicated region
    $region34: #{_mlp_block_padded.1} parent=1 // pred_check
      _
    $region35: #{_mlp_block_padded.1} parent=1 // pred_check_branch
      %37 = sbr.rel (0) target = $region37
    $region36: #{_mlp_block_padded.1} parent=1 // pred_region
      _
    $region37: #{_mlp_block_padded.1} parent=1 // pred_fallthru
      _
    // Predicated region
    $region38: #{_mlp_block_padded.1} parent=1 // pred_check
      _
    $region39: #{_mlp_block_padded.1} parent=1 // pred_check_branch
      %39 = sbr.rel (0) target = $region41
    $region40: #{_mlp_block_padded.1} parent=1 // pred_region
      %s41 = ssub.s32 2048, 2048
      %42 = vsyncadd [#allocation3], %s41
      %s43 = sshll.u32 [#allocation2], 4
      %s44 = int_to_ptr.vmem [resolvable:$true] %s43
      %49 = dma.hbm_to_vmem [thread:$0]  %s9, 2048, %s44, [#allocation3], 128, 128, 8
    $region41: #{_mlp_block_padded.1} parent=1 // pred_fallthru
      _
    // Predicated region
    $region42: #{_mlp_block_padded.1} parent=1 // pred_check
      _
    $region43: #{_mlp_block_padded.1} parent=1 // pred_check_branch
      %51 = sbr.rel (0) target = $region45
    $region44: #{_mlp_block_padded.1} parent=1 // pred_region
      _
    $region45: #{_mlp_block_padded.1} parent=1 // pred_fallthru
      _
    // Predicated region
    $region46: #{_mlp_block_padded.1} parent=1 // pred_check
      _
    $region47: #{_mlp_block_padded.1} parent=1 // pred_check_branch
      %53 = sbr.rel (0) target = $region49
    $region48: #{_mlp_block_padded.1} parent=1 // pred_region
      _
    $region49: #{_mlp_block_padded.1} parent=1 // pred_fallthru
      _
    // Predicated region
    $region50: #{_mlp_block_padded.1} parent=1 // pred_check
      _
    $region51: #{_mlp_block_padded.1} parent=1 // pred_check_branch
      %55 = sbr.rel (0) target = $region53
    $region52: #{_mlp_block_padded.1} parent=1 // pred_region
      %s57 = ssub.s32 16, 16
      %58 = vsyncadd [#allocation4], %s57
      %s60 = sshll.u32 %s12, 4
      %s61 = int_to_ptr.vmem [resolvable:$true] %s60
      %63 = dma.vmem_to_smem %s61, 16, [#allocation5], [#allocation4]
    $region53: #{_mlp_block_padded.1} parent=1 // pred_fallthru
      _
    // Predicated region
    $region54: #{_mlp_block_padded.1} parent=1 // pred_check
      _
    $region55: #{_mlp_block_padded.1} parent=1 // pred_check_branch
      %65 = sbr.rel (0) target = $region57
    $region56: #{_mlp_block_padded.1} parent=1 // pred_region
      %66 = dma.done [#allocation3], 2048
    $region57: #{_mlp_block_padded.1} parent=1 // pred_fallthru
      _
    // Predicated region
    $region58: #{_mlp_block_padded.1} parent=1 // pred_check
      _
    $region59: #{_mlp_block_padded.1} parent=1 // pred_check_branch
      %68 = sbr.rel (0) target = $region61
    $region60: #{_mlp_block_padded.1} parent=1 // pred_region
      %69 = dma.done [#allocation4], 16
    $region61: #{_mlp_block_padded.1} parent=1 // pred_fallthru
      _
    %70 = sfence
    %v71 = vld [vmem:[%s0] sm:$0xff]
    %v72 = vld [vmem:[%s0 + $0x8] sm:$0xff]
    %v73 = vld [vmem:[%s0 + $0x10] sm:$0xff]
    %v74 = vld [vmem:[%s0 + $0x18] sm:$0xff]
    %v75 = vld [vmem:[%s0 + $0x20] sm:$0xff]
    %v76 = vld [vmem:[%s0 + $0x28] sm:$0xff]
    %v77 = vld [vmem:[%s0 + $0x30] sm:$0xff]
    %v78 = vld [vmem:[%s0 + $0x38] sm:$0xff]
    %v79 = vld [vmem:[%s0 + $0x40] sm:$0xff]
    %v80 = vld [vmem:[%s0 + $0x48] sm:$0xff]
    %v81 = vld [vmem:[%s0 + $0x50] sm:$0xff]
    %v82 = vld [vmem:[%s0 + $0x58] sm:$0xff]
    %v83 = vld [vmem:[%s0 + $0x60] sm:$0xff]
    %v84 = vld [vmem:[%s0 + $0x68] sm:$0xff]
    %v85 = vld [vmem:[%s0 + $0x70] sm:$0xff]
    %v86 = vld [vmem:[%s0 + $0x78] sm:$0xff]
    %v87 = vld [vmem:[%s1] sm:$0xff]
    %v88 = vld [vmem:[%s1 + $0x8] sm:$0xff]
    %v89 = vld [vmem:[%s1 + $0x10] sm:$0xff]
    %v90 = vld [vmem:[%s1 + $0x18] sm:$0xff]
    %v91 = vld [vmem:[%s1 + $0x20] sm:$0xff]
    %v92 = vld [vmem:[%s1 + $0x28] sm:$0xff]
    %v93 = vld [vmem:[%s1 + $0x30] sm:$0xff]
    %v94 = vld [vmem:[%s1 + $0x38] sm:$0xff]
    %v95 = vld [vmem:[%s1 + $0x40] sm:$0xff]
    %v96 = vld [vmem:[%s1 + $0x48] sm:$0xff]
    %v97 = vld [vmem:[%s1 + $0x50] sm:$0xff]
    %v98 = vld [vmem:[%s1 + $0x58] sm:$0xff]
    %v99 = vld [vmem:[%s1 + $0x60] sm:$0xff]
    %v100 = vld [vmem:[%s1 + $0x68] sm:$0xff]
    %v101 = vld [vmem:[%s1 + $0x70] sm:$0xff]
    %v102 = vld [vmem:[%s1 + $0x78] sm:$0xff]
    %v103 = vld [vmem:[%s2] sm:$0x1]
    %v105 = vlaneseq
    %v106 = vshrl.u32 %v105, 7
    %v107 = vsub.s32 0, %v106
    %v108 = vrot.slane %v103, %v107
    %110 = vmatprep.subr.mxu0 0.0
    %111 = vmatpush1.msra.mxu0 %v87
    %112 = vmatprep.subr.mxu0 0.0
    %113 = vmatpush1.msra.mxu0 %v88
    %114 = vmatprep.subr.mxu0 0.0
    %115 = vmatpush1.msra.mxu0 %v89
    %116 = vmatprep.subr.mxu0 0.0
    %117 = vmatpush1.msra.mxu0 %v90
    %118 = vmatprep.subr.mxu0 0.0
    %119 = vmatpush1.msra.mxu0 %v91
    %120 = vmatprep.subr.mxu0 0.0
    %121 = vmatpush1.msra.mxu0 %v92
    %122 = vmatprep.subr.mxu0 0.0
    %123 = vmatpush1.msra.mxu0 %v93
    %124 = vmatprep.subr.mxu0 0.0
    %125 = vmatpush1.msra.mxu0 %v94
    %126 = vmatprep.subr.mxu0 0.0
    %127 = vmatpush1.msra.mxu0 %v95
    %128 = vmatprep.subr.mxu0 0.0
    %129 = vmatpush1.msra.mxu0 %v96
    %130 = vmatprep.subr.mxu0 0.0
    %131 = vmatpush1.msra.mxu0 %v97
    %132 = vmatprep.subr.mxu0 0.0
    %133 = vmatpush1.msra.mxu0 %v98
    %134 = vmatprep.subr.mxu0 0.0
    %135 = vmatpush1.msra.mxu0 %v99
    %136 = vmatprep.subr.mxu0 0.0
    %137 = vmatpush1.msra.mxu0 %v100
    %138 = vmatprep.subr.mxu0 0.0
    %139 = vmatpush1.msra.mxu0 %v101
    %140 = vmatprep.subr.mxu0 0.0
    %141 = vmatpush1.msra.mxu0 %v102
    %142 = vmatprep.subr.mxu0 0.0
    %143 = vmatpush1.msra.mxu0 0.0
    %144 = vmatprep.subr.mxu0 0.0
    %145 = vmatpush1.msra.mxu0 0.0
    %146 = vmatprep.subr.mxu0 0.0
    %147 = vmatpush1.msra.mxu0 0.0
    %148 = vmatprep.subr.mxu0 0.0
    %149 = vmatpush1.msra.mxu0 0.0
    %150 = vmatprep.subr.mxu0 0.0
    %151 = vmatpush1.msra.mxu0 0.0
    %152 = vmatprep.subr.mxu0 0.0
    %153 = vmatpush1.msra.mxu0 0.0
    %154 = vmatprep.subr.mxu0 0.0
    %155 = vmatpush1.msra.mxu0 0.0
    %156 = vmatprep.subr.mxu0 0.0
    %157 = vmatpush1.msra.mxu0 0.0
    %158 = vmatprep.subr.mxu0 0.0
    %159 = vmatpush1.msra.mxu0 0.0
    %160 = vmatprep.subr.mxu0 0.0
    %161 = vmatpush1.msra.mxu0 0.0
    %162 = vmatprep.subr.mxu0 0.0
    %163 = vmatpush1.msra.mxu0 0.0
    %164 = vmatprep.subr.mxu0 0.0
    %165 = vmatpush1.msra.mxu0 0.0
    %166 = vmatprep.subr.mxu0 0.0
    %167 = vmatpush1.msra.mxu0 0.0
    %168 = vmatprep.subr.mxu0 0.0
    %169 = vmatpush1.msra.mxu0 0.0
    %170 = vmatprep.subr.mxu0 0.0
    %171 = vmatpush1.msra.mxu0 0.0
    %172 = vmatprep.subr.mxu0 0.0
    %173 = vmatpush1.msra.mxu0 0.0
    %174 = vmatprep.mubr.f32.mxu0 0.0
    %175 = vmatmul.mubr.f32.gmra.mrb[0].mxu0 %v71
    %v176 = vpop.f32.mrb[0].mxu0
    %v177 = vadd.f32 %v108, %v176
    %v178 = vpop.f32.mrb[0].mxu0
    %179 = vmatprep.mubr.f32.mxu0 0.0
    %180 = vmatmul.mubr.f32.gmra.mrb[0].mxu0 %v72
    %v181 = vpop.f32.mrb[0].mxu0
    %v182 = vadd.f32 %v108, %v181
    %v183 = vpop.f32.mrb[0].mxu0
    %184 = vmatprep.mubr.f32.mxu0 0.0
    %185 = vmatmul.mubr.f32.gmra.mrb[0].mxu0 %v73
    %v186 = vpop.f32.mrb[0].mxu0
    %v187 = vadd.f32 %v108, %v186
    %v188 = vpop.f32.mrb[0].mxu0
    %189 = vmatprep.mubr.f32.mxu0 0.0
    %190 = vmatmul.mubr.f32.gmra.mrb[0].mxu0 %v74
    %v191 = vpop.f32.mrb[0].mxu0
    %v192 = vadd.f32 %v108, %v191
    %v193 = vpop.f32.mrb[0].mxu0
    %194 = vmatprep.mubr.f32.mxu0 0.0
    %195 = vmatmul.mubr.f32.gmra.mrb[0].mxu0 %v75
    %v196 = vpop.f32.mrb[0].mxu0
    %v197 = vadd.f32 %v108, %v196
    %v198 = vpop.f32.mrb[0].mxu0
    %199 = vmatprep.mubr.f32.mxu0 0.0
    %200 = vmatmul.mubr.f32.gmra.mrb[0].mxu0 %v76
    %v201 = vpop.f32.mrb[0].mxu0
    %v202 = vadd.f32 %v108, %v201
    %v203 = vpop.f32.mrb[0].mxu0
    %204 = vmatprep.mubr.f32.mxu0 0.0
    %205 = vmatmul.mubr.f32.gmra.mrb[0].mxu0 %v77
    %v206 = vpop.f32.mrb[0].mxu0
    %v207 = vadd.f32 %v108, %v206
    %v208 = vpop.f32.mrb[0].mxu0
    %209 = vmatprep.mubr.f32.mxu0 0.0
    %210 = vmatmul.mubr.f32.gmra.mrb[0].mxu0 %v78
    %v211 = vpop.f32.mrb[0].mxu0
    %v212 = vadd.f32 %v108, %v211
    %v213 = vpop.f32.mrb[0].mxu0
    %214 = vmatprep.mubr.f32.mxu0 0.0
    %215 = vmatmul.mubr.f32.gmra.mrb[0].mxu0 %v79
    %v216 = vpop.f32.mrb[0].mxu0
    %v217 = vadd.f32 %v108, %v216
    %v218 = vpop.f32.mrb[0].mxu0
    %219 = vmatprep.mubr.f32.mxu0 0.0
    %220 = vmatmul.mubr.f32.gmra.mrb[0].mxu0 %v80
    %v221 = vpop.f32.mrb[0].mxu0
    %v222 = vadd.f32 %v108, %v221
    %v223 = vpop.f32.mrb[0].mxu0
    %224 = vmatprep.mubr.f32.mxu0 0.0
    %225 = vmatmul.mubr.f32.gmra.mrb[0].mxu0 %v81
    %v226 = vpop.f32.mrb[0].mxu0
    %v227 = vadd.f32 %v108, %v226
    %v228 = vpop.f32.mrb[0].mxu0
    %229 = vmatprep.mubr.f32.mxu0 0.0
    %230 = vmatmul.mubr.f32.gmra.mrb[0].mxu0 %v82
    %v231 = vpop.f32.mrb[0].mxu0
    %v232 = vadd.f32 %v108, %v231
    %v233 = vpop.f32.mrb[0].mxu0
    %234 = vmatprep.mubr.f32.mxu0 0.0
    %235 = vmatmul.mubr.f32.gmra.mrb[0].mxu0 %v83
    %v236 = vpop.f32.mrb[0].mxu0
    %v237 = vadd.f32 %v108, %v236
    %v238 = vpop.f32.mrb[0].mxu0
    %239 = vmatprep.mubr.f32.mxu0 0.0
    %240 = vmatmul.mubr.f32.gmra.mrb[0].mxu0 %v84
    %v241 = vpop.f32.mrb[0].mxu0
    %v242 = vadd.f32 %v108, %v241
    %v243 = vpop.f32.mrb[0].mxu0
    %244 = vmatprep.mubr.f32.mxu0 0.0
    %245 = vmatmul.mubr.f32.gmra.mrb[0].mxu0 %v85
    %v246 = vpop.f32.mrb[0].mxu0
    %v247 = vadd.f32 %v108, %v246
    %v248 = vpop.f32.mrb[0].mxu0
    %249 = vmatprep.mubr.f32.mxu0 0.0
    %250 = vmatmul.mubr.f32.gmra.mrb[0].mxu0 %v86
    %v251 = vpop.f32.mrb[0].mxu0
    %v252 = vadd.f32 %v108, %v251
    %v253 = vpop.f32.mrb[0].mxu0
    %254 = vdwg.mxu0
    %v255 = vld [vmem:[%s3] sm:$0xff]
    %v256 = vld [vmem:[%s3 + $0x8] sm:$0xff]
    %v257 = vld [vmem:[%s3 + $0x10] sm:$0xff]
    %v258 = vld [vmem:[%s3 + $0x18] sm:$0xff]
    %v259 = vld [vmem:[%s3 + $0x20] sm:$0xff]
    %v260 = vld [vmem:[%s3 + $0x28] sm:$0xff]
    %v261 = vld [vmem:[%s3 + $0x30] sm:$0xff]
    %v262 = vld [vmem:[%s3 + $0x38] sm:$0xff]
    %v263 = vld [vmem:[%s3 + $0x40] sm:$0xff]
    %v264 = vld [vmem:[%s3 + $0x48] sm:$0xff]
    %v265 = vld [vmem:[%s3 + $0x50] sm:$0xff]
    %v266 = vld [vmem:[%s3 + $0x58] sm:$0xff]
    %v267 = vld [vmem:[%s3 + $0x60] sm:$0xff]
    %v268 = vld [vmem:[%s3 + $0x68] sm:$0xff]
    %v269 = vld [vmem:[%s3 + $0x70] sm:$0xff]
    %v270 = vld [vmem:[%s3 + $0x78] sm:$0xff]
    %v271 = vld [vmem:[%s4] sm:$0x1]
    %v273 = vlaneseq
    %v274 = vshrl.u32 %v273, 7
    %v275 = vsub.s32 0, %v274
    %v276 = vrot.slane %v271, %v275
    %278 = vmatprep.subr.mxu0 0.0
    %279 = vmatpush1.msra.mxu0 %v255
    %280 = vmatprep.subr.mxu0 0.0
    %281 = vmatpush1.msra.mxu0 %v256
    %282 = vmatprep.subr.mxu0 0.0
    %283 = vmatpush1.msra.mxu0 %v257
    %284 = vmatprep.subr.mxu0 0.0
    %285 = vmatpush1.msra.mxu0 %v258
    %286 = vmatprep.subr.mxu0 0.0
    %287 = vmatpush1.msra.mxu0 %v259
    %288 = vmatprep.subr.mxu0 0.0
    %289 = vmatpush1.msra.mxu0 %v260
    %290 = vmatprep.subr.mxu0 0.0
    %291 = vmatpush1.msra.mxu0 %v261
    %292 = vmatprep.subr.mxu0 0.0
    %293 = vmatpush1.msra.mxu0 %v262
    %294 = vmatprep.subr.mxu0 0.0
    %295 = vmatpush1.msra.mxu0 %v263
    %296 = vmatprep.subr.mxu0 0.0
    %297 = vmatpush1.msra.mxu0 %v264
    %298 = vmatprep.subr.mxu0 0.0
    %299 = vmatpush1.msra.mxu0 %v265
    %300 = vmatprep.subr.mxu0 0.0
    %301 = vmatpush1.msra.mxu0 %v266
    %302 = vmatprep.subr.mxu0 0.0
    %303 = vmatpush1.msra.mxu0 %v267
    %304 = vmatprep.subr.mxu0 0.0
    %305 = vmatpush1.msra.mxu0 %v268
    %306 = vmatprep.subr.mxu0 0.0
    %307 = vmatpush1.msra.mxu0 %v269
    %308 = vmatprep.subr.mxu0 0.0
    %309 = vmatpush1.msra.mxu0 %v270
    %310 = vmatprep.subr.mxu0 0.0
    %311 = vmatpush1.msra.mxu0 0.0
    %312 = vmatprep.subr.mxu0 0.0
    %313 = vmatpush1.msra.mxu0 0.0
    %314 = vmatprep.subr.mxu0 0.0
    %315 = vmatpush1.msra.mxu0 0.0
    %316 = vmatprep.subr.mxu0 0.0
    %317 = vmatpush1.msra.mxu0 0.0
    %318 = vmatprep.subr.mxu0 0.0
    %319 = vmatpush1.msra.mxu0 0.0
    %320 = vmatprep.subr.mxu0 0.0
    %321 = vmatpush1.msra.mxu0 0.0
    %322 = vmatprep.subr.mxu0 0.0
    %323 = vmatpush1.msra.mxu0 0.0
    %324 = vmatprep.subr.mxu0 0.0
    %325 = vmatpush1.msra.mxu0 0.0
    %326 = vmatprep.subr.mxu0 0.0
    %327 = vmatpush1.msra.mxu0 0.0
    %328 = vmatprep.subr.mxu0 0.0
    %329 = vmatpush1.msra.mxu0 0.0
    %330 = vmatprep.subr.mxu0 0.0
    %331 = vmatpush1.msra.mxu0 0.0
    %332 = vmatprep.subr.mxu0 0.0
    %333 = vmatpush1.msra.mxu0 0.0
    %334 = vmatprep.subr.mxu0 0.0
    %335 = vmatpush1.msra.mxu0 0.0
    %336 = vmatprep.subr.mxu0 0.0
    %337 = vmatpush1.msra.mxu0 0.0
    %338 = vmatprep.subr.mxu0 0.0
    %339 = vmatpush1.msra.mxu0 0.0
    %340 = vmatprep.subr.mxu0 0.0
    %341 = vmatpush1.msra.mxu0 0.0
    %342 = vmatprep.mubr.f32.mxu0 0.0
    %343 = vmatmul.mubr.f32.gmra.mrb[0].mxu0 %v177
    %v344 = vpop.f32.mrb[0].mxu0
    %v345 = vadd.f32 %v276, %v344
    %v346 = vpop.f32.mrb[0].mxu0
    %347 = vmatprep.mubr.f32.mxu0 0.0
    %348 = vmatmul.mubr.f32.gmra.mrb[0].mxu0 %v182
    %v349 = vpop.f32.mrb[0].mxu0
    %v350 = vadd.f32 %v276, %v349
    %v351 = vpop.f32.mrb[0].mxu0
    %352 = vmatprep.mubr.f32.mxu0 0.0
    %353 = vmatmul.mubr.f32.gmra.mrb[0].mxu0 %v187
    %v354 = vpop.f32.mrb[0].mxu0
    %v355 = vadd.f32 %v276, %v354
    %v356 = vpop.f32.mrb[0].mxu0
    %357 = vmatprep.mubr.f32.mxu0 0.0
    %358 = vmatmul.mubr.f32.gmra.mrb[0].mxu0 %v192
    %v359 = vpop.f32.mrb[0].mxu0
    %v360 = vadd.f32 %v276, %v359
    %v361 = vpop.f32.mrb[0].mxu0
    %362 = vmatprep.mubr.f32.mxu0 0.0
    %363 = vmatmul.mubr.f32.gmra.mrb[0].mxu0 %v197
    %v364 = vpop.f32.mrb[0].mxu0
    %v365 = vadd.f32 %v276, %v364
    %v366 = vpop.f32.mrb[0].mxu0
    %367 = vmatprep.mubr.f32.mxu0 0.0
    %368 = vmatmul.mubr.f32.gmra.mrb[0].mxu0 %v202
    %v369 = vpop.f32.mrb[0].mxu0
    %v370 = vadd.f32 %v276, %v369
    %v371 = vpop.f32.mrb[0].mxu0
    %372 = vmatprep.mubr.f32.mxu0 0.0
    %373 = vmatmul.mubr.f32.gmra.mrb[0].mxu0 %v207
    %v374 = vpop.f32.mrb[0].mxu0
    %v375 = vadd.f32 %v276, %v374
    %v376 = vpop.f32.mrb[0].mxu0
    %377 = vmatprep.mubr.f32.mxu0 0.0
    %378 = vmatmul.mubr.f32.gmra.mrb[0].mxu0 %v212
    %v379 = vpop.f32.mrb[0].mxu0
    %v380 = vadd.f32 %v276, %v379
    %v381 = vpop.f32.mrb[0].mxu0
    %382 = vmatprep.mubr.f32.mxu0 0.0
    %383 = vmatmul.mubr.f32.gmra.mrb[0].mxu0 %v217
    %v384 = vpop.f32.mrb[0].mxu0
    %v385 = vadd.f32 %v276, %v384
    %v386 = vpop.f32.mrb[0].mxu0
    %387 = vmatprep.mubr.f32.mxu0 0.0
    %388 = vmatmul.mubr.f32.gmra.mrb[0].mxu0 %v222
    %v389 = vpop.f32.mrb[0].mxu0
    %v390 = vadd.f32 %v276, %v389
    %v391 = vpop.f32.mrb[0].mxu0
    %392 = vmatprep.mubr.f32.mxu0 0.0
    %393 = vmatmul.mubr.f32.gmra.mrb[0].mxu0 %v227
    %v394 = vpop.f32.mrb[0].mxu0
    %v395 = vadd.f32 %v276, %v394
    %v396 = vpop.f32.mrb[0].mxu0
    %397 = vmatprep.mubr.f32.mxu0 0.0
    %398 = vmatmul.mubr.f32.gmra.mrb[0].mxu0 %v232
    %v399 = vpop.f32.mrb[0].mxu0
    %v400 = vadd.f32 %v276, %v399
    %v401 = vpop.f32.mrb[0].mxu0
    %402 = vmatprep.mubr.f32.mxu0 0.0
    %403 = vmatmul.mubr.f32.gmra.mrb[0].mxu0 %v237
    %v404 = vpop.f32.mrb[0].mxu0
    %v405 = vadd.f32 %v276, %v404
    %v406 = vpop.f32.mrb[0].mxu0
    %407 = vmatprep.mubr.f32.mxu0 0.0
    %408 = vmatmul.mubr.f32.gmra.mrb[0].mxu0 %v242
    %v409 = vpop.f32.mrb[0].mxu0
    %v410 = vadd.f32 %v276, %v409
    %v411 = vpop.f32.mrb[0].mxu0
    %412 = vmatprep.mubr.f32.mxu0 0.0
    %413 = vmatmul.mubr.f32.gmra.mrb[0].mxu0 %v247
    %v414 = vpop.f32.mrb[0].mxu0
    %v415 = vadd.f32 %v276, %v414
    %v416 = vpop.f32.mrb[0].mxu0
    %417 = vmatprep.mubr.f32.mxu0 0.0
    %418 = vmatmul.mubr.f32.gmra.mrb[0].mxu0 %v252
    %v419 = vpop.f32.mrb[0].mxu0
    %v420 = vadd.f32 %v276, %v419
    %v421 = vpop.f32.mrb[0].mxu0
    %422 = vdwg.mxu0
    %423 = vadd.xlane.f32.xlu0 %v345
    %v424 = vpop.xlane.xlu0 %423
    %425 = vadd.xlane.f32.xlu0 %v350
    %v426 = vpop.xlane.xlu0 %425
    %427 = vadd.xlane.f32.xlu0 %v355
    %v428 = vpop.xlane.xlu0 %427
    %429 = vadd.xlane.f32.xlu0 %v360
    %v430 = vpop.xlane.xlu0 %429
    %431 = vadd.xlane.f32.xlu0 %v365
    %v432 = vpop.xlane.xlu0 %431
    %433 = vadd.xlane.f32.xlu0 %v370
    %v434 = vpop.xlane.xlu0 %433
    %435 = vadd.xlane.f32.xlu0 %v375
    %v436 = vpop.xlane.xlu0 %435
    %437 = vadd.xlane.f32.xlu0 %v380
    %v438 = vpop.xlane.xlu0 %437
    %439 = vadd.xlane.f32.xlu0 %v385
    %v440 = vpop.xlane.xlu0 %439
    %441 = vadd.xlane.f32.xlu0 %v390
    %v442 = vpop.xlane.xlu0 %441
    %443 = vadd.xlane.f32.xlu0 %v395
    %v444 = vpop.xlane.xlu0 %443
    %445 = vadd.xlane.f32.xlu0 %v400
    %v446 = vpop.xlane.xlu0 %445
    %447 = vadd.xlane.f32.xlu0 %v405
    %v448 = vpop.xlane.xlu0 %447
    %449 = vadd.xlane.f32.xlu0 %v410
    %v450 = vpop.xlane.xlu0 %449
    %451 = vadd.xlane.f32.xlu0 %v415
    %v452 = vpop.xlane.xlu0 %451
    %453 = vadd.xlane.f32.xlu0 %v420
    %v454 = vpop.xlane.xlu0 %453
    %v455 = vmul.f32 %v424, 0.03125
    %v456 = vmul.f32 %v426, 0.03125
    %v457 = vmul.f32 %v428, 0.03125
    %v458 = vmul.f32 %v430, 0.03125
    %v459 = vmul.f32 %v432, 0.03125
    %v460 = vmul.f32 %v434, 0.03125
    %v461 = vmul.f32 %v436, 0.03125
    %v462 = vmul.f32 %v438, 0.03125
    %v463 = vmul.f32 %v440, 0.03125
    %v464 = vmul.f32 %v442, 0.03125
    %v465 = vmul.f32 %v444, 0.03125
    %v466 = vmul.f32 %v446, 0.03125
    %v467 = vmul.f32 %v448, 0.03125
    %v468 = vmul.f32 %v450, 0.03125
    %v469 = vmul.f32 %v452, 0.03125
    %v470 = vmul.f32 %v454, 0.03125
    %v471 = vsub.f32 %v345, %v455
    %v472 = vsub.f32 %v350, %v456
    %v473 = vsub.f32 %v355, %v457
    %v474 = vsub.f32 %v360, %v458
    %v475 = vsub.f32 %v365, %v459
    %v476 = vsub.f32 %v370, %v460
    %v477 = vsub.f32 %v375, %v461
    %v478 = vsub.f32 %v380, %v462
    %v479 = vsub.f32 %v385, %v463
    %v480 = vsub.f32 %v390, %v464
    %v481 = vsub.f32 %v395, %v465
    %v482 = vsub.f32 %v400, %v466
    %v483 = vsub.f32 %v405, %v467
    %v484 = vsub.f32 %v410, %v468
    %v485 = vsub.f32 %v415, %v469
    %v486 = vsub.f32 %v420, %v470
    %v487 = vld [vmem:[%s11] sm:$0x1]
    %v489 = vlaneseq
    %v490 = vshrl.u32 %v489, 7
    %v491 = vsub.s32 0, %v490
    %v492 = vrot.slane %v487, %v491
    %v494 = vmul.f32 %v471, %v492
    %v495 = vmul.f32 %v472, %v492
    %v496 = vmul.f32 %v473, %v492
    %v497 = vmul.f32 %v474, %v492
    %v498 = vmul.f32 %v475, %v492
    %v499 = vmul.f32 %v476, %v492
    %v500 = vmul.f32 %v477, %v492
    %v501 = vmul.f32 %v478, %v492
    %v502 = vmul.f32 %v479, %v492
    %v503 = vmul.f32 %v480, %v492
    %v504 = vmul.f32 %v481, %v492
    %v505 = vmul.f32 %v482, %v492
    %v506 = vmul.f32 %v483, %v492
    %v507 = vmul.f32 %v484, %v492
    %v508 = vmul.f32 %v485, %v492
    %v509 = vmul.f32 %v486, %v492
    %v510 = vmul.f32 %v494, %v494
    %v511 = vmul.f32 %v495, %v495
    %v512 = vmul.f32 %v496, %v496
    %v513 = vmul.f32 %v497, %v497
    %v514 = vmul.f32 %v498, %v498
    %v515 = vmul.f32 %v499, %v499
    %v516 = vmul.f32 %v500, %v500
    %v517 = vmul.f32 %v501, %v501
    %v518 = vmul.f32 %v502, %v502
    %v519 = vmul.f32 %v503, %v503
    %v520 = vmul.f32 %v504, %v504
    %v521 = vmul.f32 %v505, %v505
    %v522 = vmul.f32 %v506, %v506
    %v523 = vmul.f32 %v507, %v507
    %v524 = vmul.f32 %v508, %v508
    %v525 = vmul.f32 %v509, %v509
    %526 = vadd.xlane.f32.xlu0 %v510
    %v527 = vpop.xlane.xlu0 %526
    %528 = vadd.xlane.f32.xlu0 %v511
    %v529 = vpop.xlane.xlu0 %528
    %530 = vadd.xlane.f32.xlu0 %v512
    %v531 = vpop.xlane.xlu0 %530
    %532 = vadd.xlane.f32.xlu0 %v513
    %v533 = vpop.xlane.xlu0 %532
    %534 = vadd.xlane.f32.xlu0 %v514
    %v535 = vpop.xlane.xlu0 %534
    %536 = vadd.xlane.f32.xlu0 %v515
    %v537 = vpop.xlane.xlu0 %536
    %538 = vadd.xlane.f32.xlu0 %v516
    %v539 = vpop.xlane.xlu0 %538
    %540 = vadd.xlane.f32.xlu0 %v517
    %v541 = vpop.xlane.xlu0 %540
    %542 = vadd.xlane.f32.xlu0 %v518
    %v543 = vpop.xlane.xlu0 %542
    %544 = vadd.xlane.f32.xlu0 %v519
    %v545 = vpop.xlane.xlu0 %544
    %546 = vadd.xlane.f32.xlu0 %v520
    %v547 = vpop.xlane.xlu0 %546
    %548 = vadd.xlane.f32.xlu0 %v521
    %v549 = vpop.xlane.xlu0 %548
    %550 = vadd.xlane.f32.xlu0 %v522
    %v551 = vpop.xlane.xlu0 %550
    %552 = vadd.xlane.f32.xlu0 %v523
    %v553 = vpop.xlane.xlu0 %552
    %554 = vadd.xlane.f32.xlu0 %v524
    %v555 = vpop.xlane.xlu0 %554
    %556 = vadd.xlane.f32.xlu0 %v525
    %v557 = vpop.xlane.xlu0 %556
    %v558 = vmul.f32 %v527, 0.03125
    %v559 = vmul.f32 %v529, 0.03125
    %v560 = vmul.f32 %v531, 0.03125
    %v561 = vmul.f32 %v533, 0.03125
    %v562 = vmul.f32 %v535, 0.03125
    %v563 = vmul.f32 %v537, 0.03125
    %v564 = vmul.f32 %v539, 0.03125
    %v565 = vmul.f32 %v541, 0.03125
    %v566 = vmul.f32 %v543, 0.03125
    %v567 = vmul.f32 %v545, 0.03125
    %v568 = vmul.f32 %v547, 0.03125
    %v569 = vmul.f32 %v549, 0.03125
    %v570 = vmul.f32 %v551, 0.03125
    %v571 = vmul.f32 %v553, 0.03125
    %v572 = vmul.f32 %v555, 0.03125
    %v573 = vmul.f32 %v557, 0.03125
    %v574 = vadd.f32 %v558, 1e-05
    %v575 = vadd.f32 %v559, 1e-05
    %v576 = vadd.f32 %v560, 1e-05
    %v577 = vadd.f32 %v561, 1e-05
    %v578 = vadd.f32 %v562, 1e-05
    %v579 = vadd.f32 %v563, 1e-05
    %v580 = vadd.f32 %v564, 1e-05
    %v581 = vadd.f32 %v565, 1e-05
    %v582 = vadd.f32 %v566, 1e-05
    %v583 = vadd.f32 %v567, 1e-05
    %v584 = vadd.f32 %v568, 1e-05
    %v585 = vadd.f32 %v569, 1e-05
    %v586 = vadd.f32 %v570, 1e-05
    %v587 = vadd.f32 %v571, 1e-05
    %v588 = vadd.f32 %v572, 1e-05
    %v589 = vadd.f32 %v573, 1e-05
    %v590 = vrsqrt.pop %v574
    %v591 = vrsqrt.pop %v575
    %v592 = vrsqrt.pop %v576
    %v593 = vrsqrt.pop %v577
    %v594 = vrsqrt.pop %v578
    %v595 = vrsqrt.pop %v579
    %v596 = vrsqrt.pop %v580
    %v597 = vrsqrt.pop %v581
    %v598 = vrsqrt.pop %v582
    %v599 = vrsqrt.pop %v583
    %v600 = vrsqrt.pop %v584
    %v601 = vrsqrt.pop %v585
    %v602 = vrsqrt.pop %v586
    %v603 = vrsqrt.pop %v587
    %v604 = vrsqrt.pop %v588
    %v605 = vrsqrt.pop %v589
    %v606 = vld [vmem:[%s5] sm:$0x1]
    %v608 = vlaneseq
    %v609 = vshrl.u32 %v608, 7
    %v610 = vsub.s32 0, %v609
    %v611 = vrot.slane %v606, %v610
    %v613 = vmul.f32 %v590, %v611
    %v614 = vmul.f32 %v591, %v611
    %v615 = vmul.f32 %v592, %v611
    %v616 = vmul.f32 %v593, %v611
    %v617 = vmul.f32 %v594, %v611
    %v618 = vmul.f32 %v595, %v611
    %v619 = vmul.f32 %v596, %v611
    %v620 = vmul.f32 %v597, %v611
    %v621 = vmul.f32 %v598, %v611
    %v622 = vmul.f32 %v599, %v611
    %v623 = vmul.f32 %v600, %v611
    %v624 = vmul.f32 %v601, %v611
    %v625 = vmul.f32 %v602, %v611
    %v626 = vmul.f32 %v603, %v611
    %v627 = vmul.f32 %v604, %v611
    %v628 = vmul.f32 %v605, %v611
    %v629 = vmul.f32 %v471, %v613
    %v630 = vmul.f32 %v472, %v614
    %v631 = vmul.f32 %v473, %v615
    %v632 = vmul.f32 %v474, %v616
    %v633 = vmul.f32 %v475, %v617
    %v634 = vmul.f32 %v476, %v618
    %v635 = vmul.f32 %v477, %v619
    %v636 = vmul.f32 %v478, %v620
    %v637 = vmul.f32 %v479, %v621
    %v638 = vmul.f32 %v480, %v622
    %v639 = vmul.f32 %v481, %v623
    %v640 = vmul.f32 %v482, %v624
    %v641 = vmul.f32 %v483, %v625
    %v642 = vmul.f32 %v484, %v626
    %v643 = vmul.f32 %v485, %v627
    %v644 = vmul.f32 %v486, %v628
    %v645 = vld [vmem:[%s6] sm:$0x1]
    %v647 = vlaneseq
    %v648 = vshrl.u32 %v647, 7
    %v649 = vsub.s32 0, %v648
    %v650 = vrot.slane %v645, %v649
    %v652 = vadd.f32 %v629, %v650
    %v653 = vadd.f32 %v630, %v650
    %v654 = vadd.f32 %v631, %v650
    %v655 = vadd.f32 %v632, %v650
    %v656 = vadd.f32 %v633, %v650
    %v657 = vadd.f32 %v634, %v650
    %v658 = vadd.f32 %v635, %v650
    %v659 = vadd.f32 %v636, %v650
    %v660 = vadd.f32 %v637, %v650
    %v661 = vadd.f32 %v638, %v650
    %v662 = vadd.f32 %v639, %v650
    %v663 = vadd.f32 %v640, %v650
    %v664 = vadd.f32 %v641, %v650
    %v665 = vadd.f32 %v642, %v650
    %v666 = vadd.f32 %v643, %v650
    %v667 = vadd.f32 %v644, %v650
    %s668 = sld [smem:[#allocation5]]
    %vm669 = vcmp.ge.f32.partialorder %v652, 0.0
    %vm670 = vcmp.ge.f32.partialorder %v653, 0.0
    %vm671 = vcmp.ge.f32.partialorder %v654, 0.0
    %vm672 = vcmp.ge.f32.partialorder %v655, 0.0
    %vm673 = vcmp.ge.f32.partialorder %v656, 0.0
    %vm674 = vcmp.ge.f32.partialorder %v657, 0.0
    %vm675 = vcmp.ge.f32.partialorder %v658, 0.0
    %vm676 = vcmp.ge.f32.partialorder %v659, 0.0
    %vm677 = vcmp.ge.f32.partialorder %v660, 0.0
    %vm678 = vcmp.ge.f32.partialorder %v661, 0.0
    %vm679 = vcmp.ge.f32.partialorder %v662, 0.0
    %vm680 = vcmp.ge.f32.partialorder %v663, 0.0
    %vm681 = vcmp.ge.f32.partialorder %v664, 0.0
    %vm682 = vcmp.ge.f32.partialorder %v665, 0.0
    %vm683 = vcmp.ge.f32.partialorder %v666, 0.0
    %vm684 = vcmp.ge.f32.partialorder %v667, 0.0
    %v685 = vstv %s668
    %v686 = vmul.f32 %v685, %v652
    %v687 = vmul.f32 %v685, %v653
    %v688 = vmul.f32 %v685, %v654
    %v689 = vmul.f32 %v685, %v655
    %v690 = vmul.f32 %v685, %v656
    %v691 = vmul.f32 %v685, %v657
    %v692 = vmul.f32 %v685, %v658
    %v693 = vmul.f32 %v685, %v659
    %v694 = vmul.f32 %v685, %v660
    %v695 = vmul.f32 %v685, %v661
    %v696 = vmul.f32 %v685, %v662
    %v697 = vmul.f32 %v685, %v663
    %v698 = vmul.f32 %v685, %v664
    %v699 = vmul.f32 %v685, %v665
    %v700 = vmul.f32 %v685, %v666
    %v701 = vmul.f32 %v685, %v667
    %v702 = vsel %vm669, %v652, %v686
    %v703 = vsel %vm670, %v653, %v687
    %v704 = vsel %vm671, %v654, %v688
    %v705 = vsel %vm672, %v655, %v689
    %v706 = vsel %vm673, %v656, %v690
    %v707 = vsel %vm674, %v657, %v691
    %v708 = vsel %vm675, %v658, %v692
    %v709 = vsel %vm676, %v659, %v693
    %v710 = vsel %vm677, %v660, %v694
    %v711 = vsel %vm678, %v661, %v695
    %v712 = vsel %vm679, %v662, %v696
    %v713 = vsel %vm680, %v663, %v697
    %v714 = vsel %vm681, %v664, %v698
    %v715 = vsel %vm682, %v665, %v699
    %v716 = vsel %vm683, %v666, %v700
    %v717 = vsel %vm684, %v667, %v701
    %v718 = vld [vmem:[%s7] sm:$0xff]
    %v719 = vld [vmem:[%s7 + $0x8] sm:$0xff]
    %v720 = vld [vmem:[%s7 + $0x10] sm:$0xff]
    %v721 = vld [vmem:[%s7 + $0x18] sm:$0xff]
    %v722 = vld [vmem:[%s7 + $0x20] sm:$0xff]
    %v723 = vld [vmem:[%s7 + $0x28] sm:$0xff]
    %v724 = vld [vmem:[%s7 + $0x30] sm:$0xff]
    %v725 = vld [vmem:[%s7 + $0x38] sm:$0xff]
    %v726 = vld [vmem:[%s7 + $0x40] sm:$0xff]
    %v727 = vld [vmem:[%s7 + $0x48] sm:$0xff]
    %v728 = vld [vmem:[%s7 + $0x50] sm:$0xff]
    %v729 = vld [vmem:[%s7 + $0x58] sm:$0xff]
    %v730 = vld [vmem:[%s7 + $0x60] sm:$0xff]
    %v731 = vld [vmem:[%s7 + $0x68] sm:$0xff]
    %v732 = vld [vmem:[%s7 + $0x70] sm:$0xff]
    %v733 = vld [vmem:[%s7 + $0x78] sm:$0xff]
    %v734 = vld [vmem:[%s8] sm:$0x1]
    %v736 = vlaneseq
    %v737 = vshrl.u32 %v736, 7
    %v738 = vsub.s32 0, %v737
    %v739 = vrot.slane %v734, %v738
    %741 = vmatprep.subr.mxu0 0.0
    %742 = vmatpush1.msra.mxu0 %v718
    %743 = vmatprep.subr.mxu0 0.0
    %744 = vmatpush1.msra.mxu0 %v719
    %745 = vmatprep.subr.mxu0 0.0
    %746 = vmatpush1.msra.mxu0 %v720
    %747 = vmatprep.subr.mxu0 0.0
    %748 = vmatpush1.msra.mxu0 %v721
    %749 = vmatprep.subr.mxu0 0.0
    %750 = vmatpush1.msra.mxu0 %v722
    %751 = vmatprep.subr.mxu0 0.0
    %752 = vmatpush1.msra.mxu0 %v723
    %753 = vmatprep.subr.mxu0 0.0
    %754 = vmatpush1.msra.mxu0 %v724
    %755 = vmatprep.subr.mxu0 0.0
    %756 = vmatpush1.msra.mxu0 %v725
    %757 = vmatprep.subr.mxu0 0.0
    %758 = vmatpush1.msra.mxu0 %v726
    %759 = vmatprep.subr.mxu0 0.0
    %760 = vmatpush1.msra.mxu0 %v727
    %761 = vmatprep.subr.mxu0 0.0
    %762 = vmatpush1.msra.mxu0 %v728
    %763 = vmatprep.subr.mxu0 0.0
    %764 = vmatpush1.msra.mxu0 %v729
    %765 = vmatprep.subr.mxu0 0.0
    %766 = vmatpush1.msra.mxu0 %v730
    %767 = vmatprep.subr.mxu0 0.0
    %768 = vmatpush1.msra.mxu0 %v731
    %769 = vmatprep.subr.mxu0 0.0
    %770 = vmatpush1.msra.mxu0 %v732
    %771 = vmatprep.subr.mxu0 0.0
    %772 = vmatpush1.msra.mxu0 %v733
    %773 = vmatprep.subr.mxu0 0.0
    %774 = vmatpush1.msra.mxu0 0.0
    %775 = vmatprep.subr.mxu0 0.0
    %776 = vmatpush1.msra.mxu0 0.0
    %777 = vmatprep.subr.mxu0 0.0
    %778 = vmatpush1.msra.mxu0 0.0
    %779 = vmatprep.subr.mxu0 0.0
    %780 = vmatpush1.msra.mxu0 0.0
    %781 = vmatprep.subr.mxu0 0.0
    %782 = vmatpush1.msra.mxu0 0.0
    %783 = vmatprep.subr.mxu0 0.0
    %784 = vmatpush1.msra.mxu0 0.0
    %785 = vmatprep.subr.mxu0 0.0
    %786 = vmatpush1.msra.mxu0 0.0
    %787 = vmatprep.subr.mxu0 0.0
    %788 = vmatpush1.msra.mxu0 0.0
    %789 = vmatprep.subr.mxu0 0.0
    %790 = vmatpush1.msra.mxu0 0.0
    %791 = vmatprep.subr.mxu0 0.0
    %792 = vmatpush1.msra.mxu0 0.0
    %793 = vmatprep.subr.mxu0 0.0
    %794 = vmatpush1.msra.mxu0 0.0
    %795 = vmatprep.subr.mxu0 0.0
    %796 = vmatpush1.msra.mxu0 0.0
    %797 = vmatprep.subr.mxu0 0.0
    %798 = vmatpush1.msra.mxu0 0.0
    %799 = vmatprep.subr.mxu0 0.0
    %800 = vmatpush1.msra.mxu0 0.0
    %801 = vmatprep.subr.mxu0 0.0
    %802 = vmatpush1.msra.mxu0 0.0
    %803 = vmatprep.subr.mxu0 0.0
    %804 = vmatpush1.msra.mxu0 0.0
    %805 = vmatprep.mubr.f32.mxu0 0.0
    %806 = vmatmul.mubr.f32.gmra.mrb[0].mxu0 %v702
    %v807 = vpop.f32.mrb[0].mxu0
    %v808 = vadd.f32 %v739, %v807
    %v809 = vpop.f32.mrb[0].mxu0
    %810 = vmatprep.mubr.f32.mxu0 0.0
    %811 = vmatmul.mubr.f32.gmra.mrb[0].mxu0 %v703
    %v812 = vpop.f32.mrb[0].mxu0
    %v813 = vadd.f32 %v739, %v812
    %v814 = vpop.f32.mrb[0].mxu0
    %815 = vmatprep.mubr.f32.mxu0 0.0
    %816 = vmatmul.mubr.f32.gmra.mrb[0].mxu0 %v704
    %v817 = vpop.f32.mrb[0].mxu0
    %v818 = vadd.f32 %v739, %v817
    %v819 = vpop.f32.mrb[0].mxu0
    %820 = vmatprep.mubr.f32.mxu0 0.0
    %821 = vmatmul.mubr.f32.gmra.mrb[0].mxu0 %v705
    %v822 = vpop.f32.mrb[0].mxu0
    %v823 = vadd.f32 %v739, %v822
    %v824 = vpop.f32.mrb[0].mxu0
    %825 = vmatprep.mubr.f32.mxu0 0.0
    %826 = vmatmul.mubr.f32.gmra.mrb[0].mxu0 %v706
    %v827 = vpop.f32.mrb[0].mxu0
    %v828 = vadd.f32 %v739, %v827
    %v829 = vpop.f32.mrb[0].mxu0
    %830 = vmatprep.mubr.f32.mxu0 0.0
    %831 = vmatmul.mubr.f32.gmra.mrb[0].mxu0 %v707
    %v832 = vpop.f32.mrb[0].mxu0
    %v833 = vadd.f32 %v739, %v832
    %v834 = vpop.f32.mrb[0].mxu0
    %835 = vmatprep.mubr.f32.mxu0 0.0
    %836 = vmatmul.mubr.f32.gmra.mrb[0].mxu0 %v708
    %v837 = vpop.f32.mrb[0].mxu0
    %v838 = vadd.f32 %v739, %v837
    %v839 = vpop.f32.mrb[0].mxu0
    %840 = vmatprep.mubr.f32.mxu0 0.0
    %841 = vmatmul.mubr.f32.gmra.mrb[0].mxu0 %v709
    %v842 = vpop.f32.mrb[0].mxu0
    %v843 = vadd.f32 %v739, %v842
    %v844 = vpop.f32.mrb[0].mxu0
    %845 = vmatprep.mubr.f32.mxu0 0.0
    %846 = vmatmul.mubr.f32.gmra.mrb[0].mxu0 %v710
    %v847 = vpop.f32.mrb[0].mxu0
    %v848 = vadd.f32 %v739, %v847
    %v849 = vpop.f32.mrb[0].mxu0
    %850 = vmatprep.mubr.f32.mxu0 0.0
    %851 = vmatmul.mubr.f32.gmra.mrb[0].mxu0 %v711
    %v852 = vpop.f32.mrb[0].mxu0
    %v853 = vadd.f32 %v739, %v852
    %v854 = vpop.f32.mrb[0].mxu0
    %855 = vmatprep.mubr.f32.mxu0 0.0
    %856 = vmatmul.mubr.f32.gmra.mrb[0].mxu0 %v712
    %v857 = vpop.f32.mrb[0].mxu0
    %v858 = vadd.f32 %v739, %v857
    %v859 = vpop.f32.mrb[0].mxu0
    %860 = vmatprep.mubr.f32.mxu0 0.0
    %861 = vmatmul.mubr.f32.gmra.mrb[0].mxu0 %v713
    %v862 = vpop.f32.mrb[0].mxu0
    %v863 = vadd.f32 %v739, %v862
    %v864 = vpop.f32.mrb[0].mxu0
    %865 = vmatprep.mubr.f32.mxu0 0.0
    %866 = vmatmul.mubr.f32.gmra.mrb[0].mxu0 %v714
    %v867 = vpop.f32.mrb[0].mxu0
    %v868 = vadd.f32 %v739, %v867
    %v869 = vpop.f32.mrb[0].mxu0
    %870 = vmatprep.mubr.f32.mxu0 0.0
    %871 = vmatmul.mubr.f32.gmra.mrb[0].mxu0 %v715
    %v872 = vpop.f32.mrb[0].mxu0
    %v873 = vadd.f32 %v739, %v872
    %v874 = vpop.f32.mrb[0].mxu0
    %875 = vmatprep.mubr.f32.mxu0 0.0
    %876 = vmatmul.mubr.f32.gmra.mrb[0].mxu0 %v716
    %v877 = vpop.f32.mrb[0].mxu0
    %v878 = vadd.f32 %v739, %v877
    %v879 = vpop.f32.mrb[0].mxu0
    %880 = vmatprep.mubr.f32.mxu0 0.0
    %881 = vmatmul.mubr.f32.gmra.mrb[0].mxu0 %v717
    %v882 = vpop.f32.mrb[0].mxu0
    %v883 = vadd.f32 %v739, %v882
    %v884 = vpop.f32.mrb[0].mxu0
    %885 = vdwg.mxu0
    %v886 = vadd.f32 %v808, %v177
    %v887 = vadd.f32 %v813, %v182
    %v888 = vadd.f32 %v818, %v187
    %v889 = vadd.f32 %v823, %v192
    %v890 = vadd.f32 %v828, %v197
    %v891 = vadd.f32 %v833, %v202
    %v892 = vadd.f32 %v838, %v207
    %v893 = vadd.f32 %v843, %v212
    %v894 = vadd.f32 %v848, %v217
    %v895 = vadd.f32 %v853, %v222
    %v896 = vadd.f32 %v858, %v227
    %v897 = vadd.f32 %v863, %v232
    %v898 = vadd.f32 %v868, %v237
    %v899 = vadd.f32 %v873, %v242
    %v900 = vadd.f32 %v878, %v247
    %v901 = vadd.f32 %v883, %v252
    %v902 = vld [vmem:[#allocation2] sm:$0xff]
    %v903 = vld [vmem:[#allocation2 + $0x8] sm:$0xff]
    %v904 = vld [vmem:[#allocation2 + $0x10] sm:$0xff]
    %v905 = vld [vmem:[#allocation2 + $0x18] sm:$0xff]
    %v906 = vld [vmem:[#allocation2 + $0x20] sm:$0xff]
    %v907 = vld [vmem:[#allocation2 + $0x28] sm:$0xff]
    %v908 = vld [vmem:[#allocation2 + $0x30] sm:$0xff]
    %v909 = vld [vmem:[#allocation2 + $0x38] sm:$0xff]
    %v910 = vld [vmem:[#allocation2 + $0x40] sm:$0xff]
    %v911 = vld [vmem:[#allocation2 + $0x48] sm:$0xff]
    %v912 = vld [vmem:[#allocation2 + $0x50] sm:$0xff]
    %v913 = vld [vmem:[#allocation2 + $0x58] sm:$0xff]
    %v914 = vld [vmem:[#allocation2 + $0x60] sm:$0xff]
    %v915 = vld [vmem:[#allocation2 + $0x68] sm:$0xff]
    %v916 = vld [vmem:[#allocation2 + $0x70] sm:$0xff]
    %v917 = vld [vmem:[#allocation2 + $0x78] sm:$0xff]
    %v918 = vld [vmem:[%s10] sm:$0x1]
    %v920 = vlaneseq
    %v921 = vshrl.u32 %v920, 7
    %v922 = vsub.s32 0, %v921
    %v923 = vrot.slane %v918, %v922
    %925 = vmatprep.subr.mxu0 0.0
    %926 = vmatpush1.msra.mxu0 %v902
    %927 = vmatprep.subr.mxu0 0.0
    %928 = vmatpush1.msra.mxu0 %v903
    %929 = vmatprep.subr.mxu0 0.0
    %930 = vmatpush1.msra.mxu0 %v904
    %931 = vmatprep.subr.mxu0 0.0
    %932 = vmatpush1.msra.mxu0 %v905
    %933 = vmatprep.subr.mxu0 0.0
    %934 = vmatpush1.msra.mxu0 %v906
    %935 = vmatprep.subr.mxu0 0.0
    %936 = vmatpush1.msra.mxu0 %v907
    %937 = vmatprep.subr.mxu0 0.0
    %938 = vmatpush1.msra.mxu0 %v908
    %939 = vmatprep.subr.mxu0 0.0
    %940 = vmatpush1.msra.mxu0 %v909
    %941 = vmatprep.subr.mxu0 0.0
    %942 = vmatpush1.msra.mxu0 %v910
    %943 = vmatprep.subr.mxu0 0.0
    %944 = vmatpush1.msra.mxu0 %v911
    %945 = vmatprep.subr.mxu0 0.0
    %946 = vmatpush1.msra.mxu0 %v912
    %947 = vmatprep.subr.mxu0 0.0
    %948 = vmatpush1.msra.mxu0 %v913
    %949 = vmatprep.subr.mxu0 0.0
    %950 = vmatpush1.msra.mxu0 %v914
    %951 = vmatprep.subr.mxu0 0.0
    %952 = vmatpush1.msra.mxu0 %v915
    %953 = vmatprep.subr.mxu0 0.0
    %954 = vmatpush1.msra.mxu0 %v916
    %955 = vmatprep.subr.mxu0 0.0
    %956 = vmatpush1.msra.mxu0 %v917
    %957 = vmatprep.subr.mxu0 0.0
    %958 = vmatpush1.msra.mxu0 0.0
    %959 = vmatprep.subr.mxu0 0.0
    %960 = vmatpush1.msra.mxu0 0.0
    %961 = vmatprep.subr.mxu0 0.0
    %962 = vmatpush1.msra.mxu0 0.0
    %963 = vmatprep.subr.mxu0 0.0
    %964 = vmatpush1.msra.mxu0 0.0
    %965 = vmatprep.subr.mxu0 0.0
    %966 = vmatpush1.msra.mxu0 0.0
    %967 = vmatprep.subr.mxu0 0.0
    %968 = vmatpush1.msra.mxu0 0.0
    %969 = vmatprep.subr.mxu0 0.0
    %970 = vmatpush1.msra.mxu0 0.0
    %971 = vmatprep.subr.mxu0 0.0
    %972 = vmatpush1.msra.mxu0 0.0
    %973 = vmatprep.subr.mxu0 0.0
    %974 = vmatpush1.msra.mxu0 0.0
    %975 = vmatprep.subr.mxu0 0.0
    %976 = vmatpush1.msra.mxu0 0.0
    %977 = vmatprep.subr.mxu0 0.0
    %978 = vmatpush1.msra.mxu0 0.0
    %979 = vmatprep.subr.mxu0 0.0
    %980 = vmatpush1.msra.mxu0 0.0
    %981 = vmatprep.subr.mxu0 0.0
    %982 = vmatpush1.msra.mxu0 0.0
    %983 = vmatprep.subr.mxu0 0.0
    %984 = vmatpush1.msra.mxu0 0.0
    %985 = vmatprep.subr.mxu0 0.0
    %986 = vmatpush1.msra.mxu0 0.0
    %987 = vmatprep.subr.mxu0 0.0
    %988 = vmatpush1.msra.mxu0 0.0
    %989 = vmatprep.mubr.f32.mxu0 0.0
    %990 = vmatmul.mubr.f32.gmra.mrb[0].mxu0 %v886
    %v991 = vpop.f32.mrb[0].mxu0
    %v992 = vadd.f32 %v923, %v991
    %v993 = vpop.f32.mrb[0].mxu0
    %994 = vmatprep.mubr.f32.mxu0 0.0
    %995 = vmatmul.mubr.f32.gmra.mrb[0].mxu0 %v887
    %v996 = vpop.f32.mrb[0].mxu0
    %v997 = vadd.f32 %v923, %v996
    %v998 = vpop.f32.mrb[0].mxu0
    %999 = vmatprep.mubr.f32.mxu0 0.0
    %1000 = vmatmul.mubr.f32.gmra.mrb[0].mxu0 %v888
    %v1001 = vpop.f32.mrb[0].mxu0
    %v1002 = vadd.f32 %v923, %v1001
    %v1003 = vpop.f32.mrb[0].mxu0
    %1004 = vmatprep.mubr.f32.mxu0 0.0
    %1005 = vmatmul.mubr.f32.gmra.mrb[0].mxu0 %v889
    %v1006 = vpop.f32.mrb[0].mxu0
    %v1007 = vadd.f32 %v923, %v1006
    %v1008 = vpop.f32.mrb[0].mxu0
    %1009 = vmatprep.mubr.f32.mxu0 0.0
    %1010 = vmatmul.mubr.f32.gmra.mrb[0].mxu0 %v890
    %v1011 = vpop.f32.mrb[0].mxu0
    %v1012 = vadd.f32 %v923, %v1011
    %v1013 = vpop.f32.mrb[0].mxu0
    %1014 = vmatprep.mubr.f32.mxu0 0.0
    %1015 = vmatmul.mubr.f32.gmra.mrb[0].mxu0 %v891
    %v1016 = vpop.f32.mrb[0].mxu0
    %v1017 = vadd.f32 %v923, %v1016
    %v1018 = vpop.f32.mrb[0].mxu0
    %1019 = vmatprep.mubr.f32.mxu0 0.0
    %1020 = vmatmul.mubr.f32.gmra.mrb[0].mxu0 %v892
    %v1021 = vpop.f32.mrb[0].mxu0
    %v1022 = vadd.f32 %v923, %v1021
    %v1023 = vpop.f32.mrb[0].mxu0
    %1024 = vmatprep.mubr.f32.mxu0 0.0
    %1025 = vmatmul.mubr.f32.gmra.mrb[0].mxu0 %v893
    %v1026 = vpop.f32.mrb[0].mxu0
    %v1027 = vadd.f32 %v923, %v1026
    %v1028 = vpop.f32.mrb[0].mxu0
    %1029 = vmatprep.mubr.f32.mxu0 0.0
    %1030 = vmatmul.mubr.f32.gmra.mrb[0].mxu0 %v894
    %v1031 = vpop.f32.mrb[0].mxu0
    %v1032 = vadd.f32 %v923, %v1031
    %v1033 = vpop.f32.mrb[0].mxu0
    %1034 = vmatprep.mubr.f32.mxu0 0.0
    %1035 = vmatmul.mubr.f32.gmra.mrb[0].mxu0 %v895
    %v1036 = vpop.f32.mrb[0].mxu0
    %v1037 = vadd.f32 %v923, %v1036
    %v1038 = vpop.f32.mrb[0].mxu0
    %1039 = vmatprep.mubr.f32.mxu0 0.0
    %1040 = vmatmul.mubr.f32.gmra.mrb[0].mxu0 %v896
    %v1041 = vpop.f32.mrb[0].mxu0
    %v1042 = vadd.f32 %v923, %v1041
    %v1043 = vpop.f32.mrb[0].mxu0
    %1044 = vmatprep.mubr.f32.mxu0 0.0
    %1045 = vmatmul.mubr.f32.gmra.mrb[0].mxu0 %v897
    %v1046 = vpop.f32.mrb[0].mxu0
    %v1047 = vadd.f32 %v923, %v1046
    %v1048 = vpop.f32.mrb[0].mxu0
    %1049 = vmatprep.mubr.f32.mxu0 0.0
    %1050 = vmatmul.mubr.f32.gmra.mrb[0].mxu0 %v898
    %v1051 = vpop.f32.mrb[0].mxu0
    %v1052 = vadd.f32 %v923, %v1051
    %v1053 = vpop.f32.mrb[0].mxu0
    %1054 = vmatprep.mubr.f32.mxu0 0.0
    %1055 = vmatmul.mubr.f32.gmra.mrb[0].mxu0 %v899
    %v1056 = vpop.f32.mrb[0].mxu0
    %v1057 = vadd.f32 %v923, %v1056
    %v1058 = vpop.f32.mrb[0].mxu0
    %1059 = vmatprep.mubr.f32.mxu0 0.0
    %1060 = vmatmul.mubr.f32.gmra.mrb[0].mxu0 %v900
    %v1061 = vpop.f32.mrb[0].mxu0
    %v1062 = vadd.f32 %v923, %v1061
    %v1063 = vpop.f32.mrb[0].mxu0
    %1064 = vmatprep.mubr.f32.mxu0 0.0
    %1065 = vmatmul.mubr.f32.gmra.mrb[0].mxu0 %v901
    %v1066 = vpop.f32.mrb[0].mxu0
    %v1067 = vadd.f32 %v923, %v1066
    %v1068 = vpop.f32.mrb[0].mxu0
    %1069 = vdwg.mxu0
    %s1070 = sld [smem:[#allocation5 + $0x1]]
    %vm1071 = vcmp.ge.f32.partialorder %v992, 0.0
    %vm1072 = vcmp.ge.f32.partialorder %v997, 0.0
    %vm1073 = vcmp.ge.f32.partialorder %v1002, 0.0
    %vm1074 = vcmp.ge.f32.partialorder %v1007, 0.0
    %vm1075 = vcmp.ge.f32.partialorder %v1012, 0.0
    %vm1076 = vcmp.ge.f32.partialorder %v1017, 0.0
    %vm1077 = vcmp.ge.f32.partialorder %v1022, 0.0
    %vm1078 = vcmp.ge.f32.partialorder %v1027, 0.0
    %vm1079 = vcmp.ge.f32.partialorder %v1032, 0.0
    %vm1080 = vcmp.ge.f32.partialorder %v1037, 0.0
    %vm1081 = vcmp.ge.f32.partialorder %v1042, 0.0
    %vm1082 = vcmp.ge.f32.partialorder %v1047, 0.0
    %vm1083 = vcmp.ge.f32.partialorder %v1052, 0.0
    %vm1084 = vcmp.ge.f32.partialorder %v1057, 0.0
    %vm1085 = vcmp.ge.f32.partialorder %v1062, 0.0
    %vm1086 = vcmp.ge.f32.partialorder %v1067, 0.0
    %v1087 = vstv %s1070
    %v1088 = vmul.f32 %v1087, %v992
    %v1089 = vmul.f32 %v1087, %v997
    %v1090 = vmul.f32 %v1087, %v1002
    %v1091 = vmul.f32 %v1087, %v1007
    %v1092 = vmul.f32 %v1087, %v1012
    %v1093 = vmul.f32 %v1087, %v1017
    %v1094 = vmul.f32 %v1087, %v1022
    %v1095 = vmul.f32 %v1087, %v1027
    %v1096 = vmul.f32 %v1087, %v1032
    %v1097 = vmul.f32 %v1087, %v1037
    %v1098 = vmul.f32 %v1087, %v1042
    %v1099 = vmul.f32 %v1087, %v1047
    %v1100 = vmul.f32 %v1087, %v1052
    %v1101 = vmul.f32 %v1087, %v1057
    %v1102 = vmul.f32 %v1087, %v1062
    %v1103 = vmul.f32 %v1087, %v1067
    %v1104 = vsel %vm1071, %v992, %v1088
    %v1105 = vsel %vm1072, %v997, %v1089
    %v1106 = vsel %vm1073, %v1002, %v1090
    %v1107 = vsel %vm1074, %v1007, %v1091
    %v1108 = vsel %vm1075, %v1012, %v1092
    %v1109 = vsel %vm1076, %v1017, %v1093
    %v1110 = vsel %vm1077, %v1022, %v1094
    %v1111 = vsel %vm1078, %v1027, %v1095
    %v1112 = vsel %vm1079, %v1032, %v1096
    %v1113 = vsel %vm1080, %v1037, %v1097
    %v1114 = vsel %vm1081, %v1042, %v1098
    %v1115 = vsel %vm1082, %v1047, %v1099
    %v1116 = vsel %vm1083, %v1052, %v1100
    %v1117 = vsel %vm1084, %v1057, %v1101
    %v1118 = vsel %vm1085, %v1062, %v1102
    %v1119 = vsel %vm1086, %v1067, %v1103
    %1120 = vst [vmem:[%s13] sm:$0xff] %v1104
    %1121 = vst [vmem:[%s13 + $0x8] sm:$0xff] %v1105
    %1122 = vst [vmem:[%s13 + $0x10] sm:$0xff] %v1106
    %1123 = vst [vmem:[%s13 + $0x18] sm:$0xff] %v1107
    %1124 = vst [vmem:[%s13 + $0x20] sm:$0xff] %v1108
    %1125 = vst [vmem:[%s13 + $0x28] sm:$0xff] %v1109
    %1126 = vst [vmem:[%s13 + $0x30] sm:$0xff] %v1110
    %1127 = vst [vmem:[%s13 + $0x38] sm:$0xff] %v1111
    %1128 = vst [vmem:[%s13 + $0x40] sm:$0xff] %v1112
    %1129 = vst [vmem:[%s13 + $0x48] sm:$0xff] %v1113
    %1130 = vst [vmem:[%s13 + $0x50] sm:$0xff] %v1114
    %1131 = vst [vmem:[%s13 + $0x58] sm:$0xff] %v1115
    %1132 = vst [vmem:[%s13 + $0x60] sm:$0xff] %v1116
    %1133 = vst [vmem:[%s13 + $0x68] sm:$0xff] %v1117
    %1134 = vst [vmem:[%s13 + $0x70] sm:$0xff] %v1118
    %1135 = vst [vmem:[%s13 + $0x78] sm:$0xff] %v1119
    // Predicated region
    $region62: #{_mlp_block_padded.1} parent=1 // pred_check
      _
    $region63: #{_mlp_block_padded.1} parent=1 // pred_check_branch
      %1137 = sbr.rel (0) target = $region65
    $region64: #{_mlp_block_padded.1} parent=1 // pred_region
      _
    $region65: #{_mlp_block_padded.1} parent=1 // pred_fallthru
      _
    // Predicated region
    $region66: #{_mlp_block_padded.1} parent=1 // pred_check
      _
    $region67: #{_mlp_block_padded.1} parent=1 // pred_check_branch
      %1139 = sbr.rel (0) target = $region69
    $region68: #{_mlp_block_padded.1} parent=1 // pred_region
      _
    $region69: #{_mlp_block_padded.1} parent=1 // pred_fallthru
      _
    %1140 = vsyncpa [#allocation3], 1
    %1141 = vsyncpa [#allocation4], 1

</llo_original>
